<compile_context>
chip_gen: v5e
topology: v5e:2x2
jax: 0.10.0
libtpu: 0.0.40
codegen_flags: <defaults>
</compile_context>

<pallas_src>
import jax
import jax.numpy as jnp
from jax.experimental import pallas as pl
from jax.experimental.pallas import tpu as pltpu


LANE = 128
VMEM_LIMIT = 48 * 1024 * 1024  # stays inside v7x's 64 MiB physical VMEM with headroom


# ----------------------------- small helpers ------------------------------

def _round_up(x, m):
    return (x + m - 1) // m * m


def _ch_pad(c):
    """Pad a channel dim to a multiple of 128 only when it is already >= 128."""
    return c if c < LANE else _round_up(c, LANE)


def _largest_divisor_leq(n, cap):
    cap = max(1, min(n, cap))
    for d in range(cap, 0, -1):
        if n % d == 0:
            return d
    return 1


def _bn_fold(bn, eps=1e-5):
    scale = bn["gamma"] * jax.lax.rsqrt(bn["var"] + eps)
    shift = bn["beta"] - bn["mean"] * scale
    return scale, shift


# ----------------------------- Pallas kernels ------------------------------

def _conv1_kernel_factory(tr, W2, Cin, F0P):
    """conv1 (1x1 stride-2) + folded BN1 + ReLU on a tr-row tile of one image."""

    def kernel(x_ref, w1_ref, t1_ref, y1c_ref, xs_ref):
        # x_ref: (tr, W2, 2*Cin) f32 — even input rows only (odd rows never DMA'd);
        # the even column of each pair is the first Cin lanes of the 2*Cin group.
        xs = x_ref[:, :, :Cin].astype(xs_ref.dtype)                 # (tr, W2, Cin)
        xs_ref[...] = xs                                            # reused by skip conv
        y = jnp.dot(xs.reshape(tr * W2, Cin), w1_ref[...],
                    preferred_element_type=jnp.float32)
        y = jnp.maximum(y + t1_ref[...], 0.0).astype(y1c_ref.dtype)
        # Width-padded store: zero halo columns + interior (lane-dense, no XLA pad).
        y1c_ref[:, 1:W2 + 1, :] = y.reshape(tr, W2, F0P)
        y1c_ref[:, 0:1, :] = jnp.zeros((tr, 1, F0P), y1c_ref.dtype)
        y1c_ref[:, W2 + 1:W2 + 2, :] = jnp.zeros((tr, 1, F0P), y1c_ref.dtype)

    return kernel


def _fused_block_kernel_factory(H2, W2, Cin, F0P, F1P, TF2):
    """conv2 3x3 + BN2 + ReLU fused with conv3 + BN3, skip conv + skip BN, add, ReLU."""

    def kernel(y1c_ref, xs_ref, w2_ref, w3_ref, ws_ref, t2_ref, t3_ref,
               out_ref, acc_ref, y2_ref):
        f = pl.program_id(1)

        @pl.when(f == 0)
        def _():
            # conv2 (3x3, pad 1): 9-tap accumulation into an f32 VMEM scratch.
            acc_ref[...] = jnp.zeros_like(acc_ref)
            for dw in range(3):                                 # width shift hoisted: 3 retiles, not 9
                win = y1c_ref[:, dw:dw + W2, :]                 # (H2, W2, F0P), zero halo cols
                for dh in range(3):
                    r0 = max(0, 1 - dh)                         # valid output rows for this tap
                    r1 = min(H2, H2 + 1 - dh)
                    rows = r1 - r0
                    s0 = r0 + dh - 1                            # matching input rows
                    part = jnp.dot(
                        win[s0:s0 + rows].reshape(rows * W2, F0P),
                        w2_ref[dh * 3 + dw],
                        preferred_element_type=jnp.float32)
                    acc_ref[r0:r1] += part.reshape(rows, W2, F1P)
            # BN2 + ReLU -> y2 (bf16), kept in VMEM across the F2-block axis.
            y2_ref[...] = jnp.maximum(
                acc_ref[...].reshape(H2 * W2, F1P) + t2_ref[...], 0.0
            ).astype(y2_ref.dtype)

        # conv3 + BN3 fused with skip conv + skip BN, residual add, final ReLU
        # for this F2-channel block (y2 never leaves VMEM).
        xs2d = xs_ref[...].reshape(H2 * W2, Cin)
        o = jnp.dot(y2_ref[...], w3_ref[...], preferred_element_type=jnp.float32)
        o = o + jnp.dot(xs2d, ws_ref[...], preferred_element_type=jnp.float32)
        o = jnp.maximum(o + t3_ref[...], 0.0)
        out_ref[...] = o.reshape(H2, W2, TF2).astype(out_ref.dtype)

    return kernel


# ----------------------------- kernel wrappers ------------------------------

def conv1_stride2_bn_relu(x6, w1, t1, *, tr, H2, W2, Cin, F0P, act_dtype):
    N = x6.shape[0]
    kernel = _conv1_kernel_factory(tr, W2, Cin, F0P)
    return pl.pallas_call(
        kernel,
        grid=(N, H2 // tr),
        in_specs=[
            # (N, H2, 2, W2, 2*Cin): row-pair dim pinned to 0 -> even rows only.
            pl.BlockSpec((None, tr, None, W2, 2 * Cin), lambda n, i: (n, i, 0, 0, 0)),
            # Grid-invariant weights/bias.  (Could be pl.Buffered(1) to halve their
            # VMEM footprint on v7x; left default-buffered for portability.)
            pl.BlockSpec((Cin, F0P), lambda n, i: (0, 0)),
            pl.BlockSpec((1, F0P), lambda n, i: (0, 0)),
        ],
        out_specs=(
            pl.BlockSpec((None, tr, W2 + 2, F0P), lambda n, i: (n, i, 0, 0)),
            pl.BlockSpec((None, tr, W2, Cin), lambda n, i: (n, i, 0, 0)),
        ),
        out_shape=(
            jax.ShapeDtypeStruct((N, H2, W2 + 2, F0P), act_dtype),  # width-padded y1
            jax.ShapeDtypeStruct((N, H2, W2, Cin), act_dtype),      # strided input slab
        ),
        compiler_params=pltpu.CompilerParams(
            dimension_semantics=("parallel", "parallel"),
            vmem_limit_bytes=VMEM_LIMIT,
        ),
    )(x6, w1, t1)


def conv2_conv3_skip_fused(y1c, xs, w2, w3, ws, t2, t3, *, H2, W2, Cin,
                           F0P, F1P, F2P, TF2, act_dtype, out_dtype):
    N = y1c.shape[0]
    nf = F2P // TF2
    kernel = _fused_block_kernel_factory(H2, W2, Cin, F0P, F1P, TF2)
    return pl.pallas_call(
        kernel,
        grid=(N, nf),
        in_specs=[
            pl.BlockSpec((None, H2, W2 + 2, F0P), lambda n, f: (n, 0, 0, 0)),
            pl.BlockSpec((None, H2, W2, Cin), lambda n, f: (n, 0, 0, 0)),
            pl.BlockSpec((9, F0P, F1P), lambda n, f: (0, 0, 0)),
            pl.BlockSpec((F1P, TF2), lambda n, f: (0, f)),
            pl.BlockSpec((Cin, TF2), lambda n, f: (0, f)),
            pl.BlockSpec((1, F1P), lambda n, f: (0, 0)),
            pl.BlockSpec((1, TF2), lambda n, f: (0, f)),
        ],
        out_specs=pl.BlockSpec((None, H2, W2, TF2), lambda n, f: (n, 0, 0, f)),
        out_shape=jax.ShapeDtypeStruct((N, H2, W2, F2P), out_dtype),
        scratch_shapes=[
            pltpu.VMEM((H2, W2, F1P), jnp.float32),   # conv2 accumulator (f32, in VMEM)
            pltpu.VMEM((H2 * W2, F1P), act_dtype),    # y2, carried across the F2 axis
        ],
        compiler_params=pltpu.CompilerParams(
            dimension_semantics=("parallel", "arbitrary"),
            vmem_limit_bytes=VMEM_LIMIT,
        ),
    )(y1c, xs, w2, w3, ws, t2, t3)


# ----------------------------- parameters ------------------------------

def init_params(key, in_channels, filters):
    f0, f1, f2 = filters
    ks = jax.random.split(key, 16)

    def conv_w(k, cout, cin, kh, kw):
        bound = 1.0 / jnp.sqrt(cin * kh * kw)
        return jax.random.uniform(k, (cout, cin, kh, kw), jnp.float32, -bound, bound)

    def conv_b(k, cout, cin, kh, kw):
        bound = 1.0 / jnp.sqrt(cin * kh * kw)
        return jax.random.uniform(k, (cout,), jnp.float32, -bound, bound)

    def bn_params(k, c):
        k1, k2, k3, k4 = jax.random.split(k, 4)
        return dict(
            gamma=1.0 + 0.1 * jax.random.normal(k1, (c,), jnp.float32),
            beta=0.05 * jax.random.normal(k2, (c,), jnp.float32),
            mean=0.1 * jax.random.normal(k3, (c,), jnp.float32),
            var=jax.random.uniform(k4, (c,), jnp.float32, 0.5, 1.5),
        )

    return dict(
        conv1_w=conv_w(ks[0], f0, in_channels, 1, 1),
        conv1_b=conv_b(ks[1], f0, in_channels, 1, 1),
        bn1=bn_params(ks[2], f0),
        conv2_w=conv_w(ks[3], f1, f0, 3, 3),
        conv2_b=conv_b(ks[4], f1, f0, 3, 3),
        bn2=bn_params(ks[5], f1),
        conv3_w=conv_w(ks[6], f2, f1, 1, 1),
        conv3_b=conv_b(ks[7], f2, f1, 1, 1),
        bn3=bn_params(ks[8], f2),
        skip_w=conv_w(ks[9], f2, in_channels, 1, 1),
        skip_b=conv_b(ks[10], f2, in_channels, 1, 1),
        skip_bn=bn_params(ks[11], f2),
    )


# ----------------------------- forward pass ------------------------------

def conv_block_forward(x_nchw, params, eps=1e-5):
    N, Cin, H, W = x_nchw.shape
    f0 = params["conv1_w"].shape[0]
    f1 = params["conv2_w"].shape[0]
    f2 = params["conv3_w"].shape[0]
    H2 = (H - 1) // 2 + 1     # 1x1 conv, stride 2, pad 0
    W2 = (W - 1) // 2 + 1

    F0P, F1P, F2P = _ch_pad(f0), _ch_pad(f1), _ch_pad(f2)
    # Output-channel block of the fused conv3/skip stage (>=256 lanes when possible,
    # bounds the per-step VMEM footprint at real ResNet widths).
    TF2 = F2P
    for cand in (512, 256, 128):
        if F2P % cand == 0:
            TF2 = cand
            break
    act_dtype = jnp.bfloat16  # MXU operand dtype; accumulation stays f32

    # ---- NCHW -> NHWC, pad spatial dims to even, free 5-D view for strided rows ----
    x = jnp.transpose(x_nchw, (0, 2, 3, 1))                     # (N, H, W, Cin)
    if H != 2 * H2 or W != 2 * W2:
        x = jnp.pad(x, ((0, 0), (0, 2 * H2 - H), (0, 2 * W2 - W), (0, 0)))
    x6 = x.reshape(N, H2, 2, W2, 2 * Cin)                       # metadata-only reshape

    # ---- fold BN into weights / one bias row; pad output-channel dims only if >=128 ----
    def pad_cols(a, tgt):
        if a.shape[-1] == tgt:
            return a
        return jnp.pad(a, ((0, 0),) * (a.ndim - 1) + ((0, tgt - a.shape[-1]),))

    def bias_row(v, tgt):
        if v.shape[0] != tgt:
            v = jnp.pad(v, (0, tgt - v.shape[0]))
        return v.reshape(1, tgt).astype(jnp.float32)

    s1, sh1 = _bn_fold(params["bn1"], eps)
    w1 = params["conv1_w"].reshape(f0, Cin).T * s1[None, :]
    w1 = pad_cols(w1, F0P).astype(act_dtype)                                    # (Cin, F0P)
    t1 = bias_row(params["conv1_b"] * s1 + sh1, F0P)

    s2, sh2 = _bn_fold(params["bn2"], eps)
    w2 = jnp.transpose(params["conv2_w"], (2, 3, 1, 0)).reshape(9, f0, f1) * s2[None, None, :]
    w2 = jnp.pad(w2, ((0, 0), (0, F0P - f0), (0, F1P - f1))).astype(act_dtype)  # (9, F0P, F1P)
    t2 = bias_row(params["conv2_b"] * s2 + sh2, F1P)

    s3, sh3 = _bn_fold(params["bn3"], eps)
    w3 = params["conv3_w"].reshape(f2, f1).T * s3[None, :]
    w3 = jnp.pad(w3, ((0, F1P - f1), (0, F2P - f2))).astype(act_dtype)          # (F1P, F2P)
    ss, shs = _bn_fold(params["skip_bn"], eps)
    ws = params["skip_w"].reshape(f2, Cin).T * ss[None, :]
    ws = pad_cols(ws, F2P).astype(act_dtype)                                    # (Cin, F2P)
    t3 = bias_row((params["conv3_b"] * s3 + sh3) + (params["skip_b"] * ss + shs), F2P)

    # ---- kernel A: conv1 (1x1 s2) + bn1 + relu; also emits the strided input slab ----
    tr = _largest_divisor_leq(H2, max(1, 512 // W2))            # ~512-row matmul tiles
    y1c, xs = conv1_stride2_bn_relu(
        x6, w1, t1, tr=tr, H2=H2, W2=W2, Cin=Cin, F0P=F0P, act_dtype=act_dtype)

    # ---- kernel B: conv2+bn2+relu, conv3+bn3, skip conv+bn, residual add, relu ----
    out = conv2_conv3_skip_fused(
        y1c, xs, w2, w3, ws, t2, t3,
        H2=H2, W2=W2, Cin=Cin, F0P=F0P, F1P=F1P, F2P=F2P, TF2=TF2,
        act_dtype=act_dtype, out_dtype=jnp.float32)             # (N, H2, W2, F2P) f32

    if F2P != f2:                       # only pay the channel-pad slice when needed
        out = out[..., :f2]
    return jnp.transpose(out, (0, 3, 1, 2))   # back to NCHW (single XLA pass)


# ----------------------------- main ------------------------------

if __name__ == "__main__":
    key = jax.random.PRNGKey(0)
    k_x, k_p = jax.random.split(key)

    N, Cin, H, W = 2, 4, 16, 16
    filters = (8, 8, 16)

    x = jax.random.normal(k_x, (N, Cin, H, W), jnp.float32)
    params = init_params(k_p, Cin, filters)

    fwd = jax.jit(conv_block_forward)
    out = jax.block_until_ready(fwd(x, params))

    assert out.shape == (N, filters[2], H // 2, W // 2), out.shape
    assert out.dtype == jnp.float32
    assert bool(jnp.all(out >= 0.0))  # final ReLU
    print("KERNEL_OK")
</pallas_src>

<mosaic_0001>
module attributes {stable_mosaic.version = 11 : i64} {
  func.func @kernel(%arg0: i32, %arg1: i32, %arg2: memref<1x8x1x8x8xf32, #tpu.memory_space<vmem>>, %arg3: memref<4x8xbf16, #tpu.memory_space<vmem>>, %arg4: memref<1x8xf32, #tpu.memory_space<vmem>>, %arg5: memref<1x8x10x8xbf16, #tpu.memory_space<vmem>>, %arg6: memref<1x8x8x4xbf16, #tpu.memory_space<vmem>>) attributes {dimension_semantics = [#tpu.dimension_semantics<parallel>, #tpu.dimension_semantics<parallel>], iteration_bounds = array<i64: 2, 1>, scalar_prefetch = 0 : i64, scratch_operands = 0 : i64, tpu.core_type = #tpu.core_type<tc>, window_params = [{transform_indices = @transform_0, window_bounds = array<i64: 1, 8, 1, 8, 8>}, {pipeline_mode = #tpu.pipeline_mode<synchronous>, transform_indices = @transform_1, window_bounds = array<i64: 4, 8>}, {pipeline_mode = #tpu.pipeline_mode<synchronous>, transform_indices = @transform_2, window_bounds = array<i64: 1, 8>}, {transform_indices = @transform_3, window_bounds = array<i64: 1, 8, 10, 8>}, {transform_indices = @transform_4, window_bounds = array<i64: 1, 8, 8, 4>}]} {
    %c0 = arith.constant 0 : index
    %c0_0 = arith.constant 0 : index
    %c0_1 = arith.constant 0 : index
    %c0_2 = arith.constant 0 : index
    %c0_3 = arith.constant 0 : index
    %0 = vector.load %arg2[%c0, %c0_0, %c0_1, %c0_2, %c0_3] : memref<1x8x1x8x8xf32, #tpu.memory_space<vmem>>, vector<1x8x1x8x4xf32>
    %1 = vector.shape_cast %0 : vector<1x8x1x8x4xf32> to vector<8x8x4xf32>
    %2 = arith.truncf %1 : vector<8x8x4xf32> to vector<8x8x4xbf16>
    %c0_4 = arith.constant 0 : index
    %c0_5 = arith.constant 0 : index
    %c0_6 = arith.constant 0 : index
    %c0_7 = arith.constant 0 : index
    %3 = vector.load %arg6[%c0_4, %c0_5, %c0_6, %c0_7] : memref<1x8x8x4xbf16, #tpu.memory_space<vmem>>, vector<1x8x8x4xbf16>
    %4 = vector.shape_cast %3 : vector<1x8x8x4xbf16> to vector<8x8x4xbf16>
    %5 = vector.shape_cast %2 : vector<8x8x4xbf16> to vector<1x8x8x4xbf16>
    tpu.vector_store %arg6[%c0_4, %c0_5, %c0_6, %c0_7], %5 {strides = array<i32>} : memref<1x8x8x4xbf16, #tpu.memory_space<vmem>>, vector<1x8x8x4xbf16>,
    %6 = vector.shape_cast %2 : vector<8x8x4xbf16> to vector<64x4xbf16>
    %c0_8 = arith.constant 0 : index
    %c0_9 = arith.constant 0 : index
    %7 = vector.load %arg3[%c0_8, %c0_9] : memref<4x8xbf16, #tpu.memory_space<vmem>>, vector<4x8xbf16>
    %cst = arith.constant dense<0.000000e+00> : vector<64x8xf32>
    %8 = tpu.matmul %6, %7, %cst {dimension_numbers = #tpu.dot_dimension_numbers<[1], [0], [0], [1], [0, 0, 1, 1], [], []>} : vector<64x4xbf16>, vector<4x8xbf16>, vector<64x8xf32> -> vector<64x8xf32>
    %c0_10 = arith.constant 0 : index
    %c0_11 = arith.constant 0 : index
    %9 = vector.load %arg4[%c0_10, %c0_11] : memref<1x8xf32, #tpu.memory_space<vmem>>, vector<1x8xf32>
    %10 = vector.broadcast %9 : vector<1x8xf32> to vector<64x8xf32>
    %11 = arith.addf %8, %10 : vector<64x8xf32>
    %cst_12 = arith.constant 0.000000e+00 : f32
    %12 = vector.broadcast %cst_12 : f32 to vector<64x8xf32>
    %13 = arith.maximumf %11, %12 : vector<64x8xf32>
    %14 = arith.truncf %13 : vector<64x8xf32> to vector<64x8xbf16>
    %15 = vector.shape_cast %14 : vector<64x8xbf16> to vector<8x8x8xbf16>
    %c0_13 = arith.constant 0 : index
    %c0_14 = arith.constant 0 : index
    %c1 = arith.constant 1 : index
    %c0_15 = arith.constant 0 : index
    %16 = vector.load %arg5[%c0_13, %c0_14, %c1, %c0_15] : memref<1x8x10x8xbf16, #tpu.memory_space<vmem>>, vector<1x8x8x8xbf16>
    %17 = vector.shape_cast %16 : vector<1x8x8x8xbf16> to vector<8x8x8xbf16>
    %18 = vector.shape_cast %15 : vector<8x8x8xbf16> to vector<1x8x8x8xbf16>
    tpu.vector_store %arg5[%c0_13, %c0_14, %c1, %c0_15], %18 {strides = array<i32>} : memref<1x8x10x8xbf16, #tpu.memory_space<vmem>>, vector<1x8x8x8xbf16>,
    %cst_16 = arith.constant 0.000000e+00 : bf16
    %19 = vector.broadcast %cst_16 : bf16 to vector<8x1x8xbf16>
    %c0_17 = arith.constant 0 : index
    %c0_18 = arith.constant 0 : index
    %c0_19 = arith.constant 0 : index
    %c0_20 = arith.constant 0 : index
    %20 = vector.load %arg5[%c0_17, %c0_18, %c0_19, %c0_20] : memref<1x8x10x8xbf16, #tpu.memory_space<vmem>>, vector<1x8x1x8xbf16>
    %21 = vector.shape_cast %20 : vector<1x8x1x8xbf16> to vector<8x1x8xbf16>
    %22 = vector.shape_cast %19 : vector<8x1x8xbf16> to vector<1x8x1x8xbf16>
    tpu.vector_store %arg5[%c0_17, %c0_18, %c0_19, %c0_20], %22 {strides = array<i32>} : memref<1x8x10x8xbf16, #tpu.memory_space<vmem>>, vector<1x8x1x8xbf16>,
    %cst_21 = arith.constant 0.000000e+00 : bf16
    %23 = vector.broadcast %cst_21 : bf16 to vector<8x1x8xbf16>
    %c0_22 = arith.constant 0 : index
    %c0_23 = arith.constant 0 : index
    %c9 = arith.constant 9 : index
    %c0_24 = arith.constant 0 : index
    %24 = vector.load %arg5[%c0_22, %c0_23, %c9, %c0_24] : memref<1x8x10x8xbf16, #tpu.memory_space<vmem>>, vector<1x8x1x8xbf16>
    %25 = vector.shape_cast %24 : vector<1x8x1x8xbf16> to vector<8x1x8xbf16>
    %26 = vector.shape_cast %23 : vector<8x1x8xbf16> to vector<1x8x1x8xbf16>
    tpu.vector_store %arg5[%c0_22, %c0_23, %c9, %c0_24], %26 {strides = array<i32>} : memref<1x8x10x8xbf16, #tpu.memory_space<vmem>>, vector<1x8x1x8xbf16>,
    return
  }
  func.func @transform_0(%arg0: i32, %arg1: i32) -> (i32, i32, i32, i32, i32) {
    %c0_i32 = arith.constant 0 : i32
    %c0_i32_0 = arith.constant 0 : i32
    %c0_i32_1 = arith.constant 0 : i32
    %c0_i32_2 = arith.constant 0 : i32
    return %arg0, %arg1, %c0_i32, %c0_i32_0, %c0_i32_1 : i32, i32, i32, i32, i32
  }
  func.func @transform_1(%arg0: i32, %arg1: i32) -> (i32, i32) {
    %c0_i32 = arith.constant 0 : i32
    %c0_i32_0 = arith.constant 0 : i32
    %c0_i32_1 = arith.constant 0 : i32
    return %c0_i32, %c0_i32_0 : i32, i32
  }
  func.func @transform_2(%arg0: i32, %arg1: i32) -> (i32, i32) {
    %c0_i32 = arith.constant 0 : i32
    %c0_i32_0 = arith.constant 0 : i32
    %c0_i32_1 = arith.constant 0 : i32
    return %c0_i32, %c0_i32_0 : i32, i32
  }
  func.func @transform_3(%arg0: i32, %arg1: i32) -> (i32, i32, i32, i32) {
    %c0_i32 = arith.constant 0 : i32
    %c0_i32_0 = arith.constant 0 : i32
    %c0_i32_1 = arith.constant 0 : i32
    return %arg0, %arg1, %c0_i32, %c0_i32_0 : i32, i32, i32, i32
  }
  func.func @transform_4(%arg0: i32, %arg1: i32) -> (i32, i32, i32, i32) {
    %c0_i32 = arith.constant 0 : i32
    %c0_i32_0 = arith.constant 0 : i32
    %c0_i32_1 = arith.constant 0 : i32
    return %arg0, %arg1, %c0_i32, %c0_i32_0 : i32, i32, i32, i32
  }
}

module attributes {stable_mosaic.version = 11 : i64} {
  func.func @kernel(%arg0: i32, %arg1: i32, %arg2: memref<1x8x10x8xbf16, #tpu.memory_space<vmem>>, %arg3: memref<1x8x8x4xbf16, #tpu.memory_space<vmem>>, %arg4: memref<9x8x8xbf16, #tpu.memory_space<vmem>>, %arg5: memref<8x16xbf16, #tpu.memory_space<vmem>>, %arg6: memref<4x16xbf16, #tpu.memory_space<vmem>>, %arg7: memref<1x8xf32, #tpu.memory_space<vmem>>, %arg8: memref<1x16xf32, #tpu.memory_space<vmem>>, %arg9: memref<1x8x8x16xf32, #tpu.memory_space<vmem>>, %arg10: memref<8x8x8xf32, #tpu.memory_space<vmem>>, %arg11: memref<64x8xbf16, #tpu.memory_space<vmem>>) attributes {dimension_semantics = [#tpu.dimension_semantics<parallel>, #tpu.dimension_semantics<arbitrary>], iteration_bounds = array<i64: 2, 1>, scalar_prefetch = 0 : i64, scratch_operands = 2 : i64, tpu.core_type = #tpu.core_type<tc>, window_params = [{transform_indices = @transform_0, window_bounds = array<i64: 1, 8, 10, 8>}, {transform_indices = @transform_1, window_bounds = array<i64: 1, 8, 8, 4>}, {pipeline_mode = #tpu.pipeline_mode<synchronous>, transform_indices = @transform_2, window_bounds = array<i64: 9, 8, 8>}, {transform_indices = @transform_3, window_bounds = array<i64: 8, 16>}, {transform_indices = @transform_4, window_bounds = array<i64: 4, 16>}, {pipeline_mode = #tpu.pipeline_mode<synchronous>, transform_indices = @transform_5, window_bounds = array<i64: 1, 8>}, {transform_indices = @transform_6, window_bounds = array<i64: 1, 16>}, {transform_indices = @transform_7, window_bounds = array<i64: 1, 8, 8, 16>}]} {
    %c0_i32 = arith.constant 0 : i32
    %0 = arith.cmpi eq, %arg1, %c0_i32 : i32
    %1 = arith.extui %0 : i1 to i32
    %c0_i32_0 = arith.constant 0 : i32
    %2 = arith.cmpi ne, %1, %c0_i32_0 : i32
    scf.if %2 {
      %cst_18 = arith.constant 0.000000e+00 : f32
      %21 = vector.broadcast %cst_18 : f32 to vector<8x8x8xf32>
      %c0_19 = arith.constant 0 : index
      %c0_20 = arith.constant 0 : index
      %c0_21 = arith.constant 0 : index
      %22 = vector.load %arg10[%c0_19, %c0_20, %c0_21] : memref<8x8x8xf32, #tpu.memory_space<vmem>>, vector<8x8x8xf32>
      tpu.vector_store %arg10[%c0_19, %c0_20, %c0_21], %21 {strides = array<i32>} : memref<8x8x8xf32, #tpu.memory_space<vmem>>, vector<8x8x8xf32>,
      %c0_22 = arith.constant 0 : index
      %c0_23 = arith.constant 0 : index
      %c0_24 = arith.constant 0 : index
      %c0_25 = arith.constant 0 : index
      %23 = vector.load %arg2[%c0_22, %c0_23, %c0_24, %c0_25] : memref<1x8x10x8xbf16, #tpu.memory_space<vmem>>, vector<1x8x8x8xbf16>
      %24 = vector.shape_cast %23 : vector<1x8x8x8xbf16> to vector<8x8x8xbf16>
      %25 = vector.extract_strided_slice %24 {offsets = [0, 0, 0], sizes = [7, 8, 8], strides = [1, 1, 1]} : vector<8x8x8xbf16> to vector<7x8x8xbf16>
      %26 = vector.shape_cast %25 : vector<7x8x8xbf16> to vector<56x8xbf16>
      %c0_26 = arith.constant 0 : index
      %c0_27 = arith.constant 0 : index
      %c0_28 = arith.constant 0 : index
      %27 = vector.load %arg4[%c0_26, %c0_27, %c0_28] : memref<9x8x8xbf16, #tpu.memory_space<vmem>>, vector<1x8x8xbf16>
      %28 = vector.shape_cast %27 : vector<1x8x8xbf16> to vector<8x8xbf16>
      %cst_29 = arith.constant dense<0.000000e+00> : vector<56x8xf32>
      %29 = tpu.matmul %26, %28, %cst_29 {dimension_numbers = #tpu.dot_dimension_numbers<[1], [0], [0], [1], [0, 0, 1, 1], [], []>} : vector<56x8xbf16>, vector<8x8xbf16>, vector<56x8xf32> -> vector<56x8xf32>
      %c1 = arith.constant 1 : index
      %c0_30 = arith.constant 0 : index
      %c0_31 = arith.constant 0 : index
      %30 = vector.load %arg10[%c1, %c0_30, %c0_31] : memref<8x8x8xf32, #tpu.memory_space<vmem>>, vector<7x8x8xf32>
      %31 = vector.shape_cast %29 : vector<56x8xf32> to vector<7x8x8xf32>
      %32 = arith.addf %30, %31 : vector<7x8x8xf32>
      %c1_32 = arith.constant 1 : index
      %c0_33 = arith.constant 0 : index
      %c0_34 = arith.constant 0 : index
      %33 = vector.load %arg10[%c1_32, %c0_33, %c0_34] : memref<8x8x8xf32, #tpu.memory_space<vmem>>, vector<7x8x8xf32>
      tpu.vector_store %arg10[%c1_32, %c0_33, %c0_34], %32 {strides = array<i32>} : memref<8x8x8xf32, #tpu.memory_space<vmem>>, vector<7x8x8xf32>,
      %34 = vector.shape_cast %24 : vector<8x8x8xbf16> to vector<64x8xbf16>
      %c3 = arith.constant 3 : index
      %c0_35 = arith.constant 0 : index
      %c0_36 = arith.constant 0 : index
      %35 = vector.load %arg4[%c3, %c0_35, %c0_36] : memref<9x8x8xbf16, #tpu.memory_space<vmem>>, vector<1x8x8xbf16>
      %36 = vector.shape_cast %35 : vector<1x8x8xbf16> to vector<8x8xbf16>
      %cst_37 = arith.constant dense<0.000000e+00> : vector<64x8xf32>
      %37 = tpu.matmul %34, %36, %cst_37 {dimension_numbers = #tpu.dot_dimension_numbers<[1], [0], [0], [1], [0, 0, 1, 1], [], []>} : vector<64x8xbf16>, vector<8x8xbf16>, vector<64x8xf32> -> vector<64x8xf32>
      %c0_38 = arith.constant 0 : index
      %c0_39 = arith.constant 0 : index
      %c0_40 = arith.constant 0 : index
      %38 = vector.load %arg10[%c0_38, %c0_39, %c0_40] : memref<8x8x8xf32, #tpu.memory_space<vmem>>, vector<8x8x8xf32>
      %39 = vector.shape_cast %37 : vector<64x8xf32> to vector<8x8x8xf32>
      %40 = arith.addf %38, %39 : vector<8x8x8xf32>
      %c0_41 = arith.constant 0 : index
      %c0_42 = arith.constant 0 : index
      %c0_43 = arith.constant 0 : index
      %41 = vector.load %arg10[%c0_41, %c0_42, %c0_43] : memref<8x8x8xf32, #tpu.memory_space<vmem>>, vector<8x8x8xf32>
      tpu.vector_store %arg10[%c0_41, %c0_42, %c0_43], %40 {strides = array<i32>} : memref<8x8x8xf32, #tpu.memory_space<vmem>>, vector<8x8x8xf32>,
      %42 = vector.extract_strided_slice %24 {offsets = [1, 0, 0], sizes = [7, 8, 8], strides = [1, 1, 1]} : vector<8x8x8xbf16> to vector<7x8x8xbf16>
      %43 = vector.shape_cast %42 : vector<7x8x8xbf16> to vector<56x8xbf16>
      %c6 = arith.constant 6 : index
      %c0_44 = arith.constant 0 : index
      %c0_45 = arith.constant 0 : index
      %44 = vector.load %arg4[%c6, %c0_44, %c0_45] : memref<9x8x8xbf16, #tpu.memory_space<vmem>>, vector<1x8x8xbf16>
      %45 = vector.shape_cast %44 : vector<1x8x8xbf16> to vector<8x8xbf16>
      %cst_46 = arith.constant dense<0.000000e+00> : vector<56x8xf32>
      %46 = tpu.matmul %43, %45, %cst_46 {dimension_numbers = #tpu.dot_dimension_numbers<[1], [0], [0], [1], [0, 0, 1, 1], [], []>} : vector<56x8xbf16>, vector<8x8xbf16>, vector<56x8xf32> -> vector<56x8xf32>
      %c0_47 = arith.constant 0 : index
      %c0_48 = arith.constant 0 : index
      %c0_49 = arith.constant 0 : index
      %47 = vector.load %arg10[%c0_47, %c0_48, %c0_49] : memref<8x8x8xf32, #tpu.memory_space<vmem>>, vector<7x8x8xf32>
      %48 = vector.shape_cast %46 : vector<56x8xf32> to vector<7x8x8xf32>
      %49 = arith.addf %47, %48 : vector<7x8x8xf32>
      %c0_50 = arith.constant 0 : index
      %c0_51 = arith.constant 0 : index
      %c0_52 = arith.constant 0 : index
      %50 = vector.load %arg10[%c0_50, %c0_51, %c0_52] : memref<8x8x8xf32, #tpu.memory_space<vmem>>, vector<7x8x8xf32>
      tpu.vector_store %arg10[%c0_50, %c0_51, %c0_52], %49 {strides = array<i32>} : memref<8x8x8xf32, #tpu.memory_space<vmem>>, vector<7x8x8xf32>,
      %c0_53 = arith.constant 0 : index
      %c0_54 = arith.constant 0 : index
      %c1_55 = arith.constant 1 : index
      %c0_56 = arith.constant 0 : index
      %51 = vector.load %arg2[%c0_53, %c0_54, %c1_55, %c0_56] : memref<1x8x10x8xbf16, #tpu.memory_space<vmem>>, vector<1x8x8x8xbf16>
      %52 = vector.shape_cast %51 : vector<1x8x8x8xbf16> to vector<8x8x8xbf16>
      %53 = vector.extract_strided_slice %52 {offsets = [0, 0, 0], sizes = [7, 8, 8], strides = [1, 1, 1]} : vector<8x8x8xbf16> to vector<7x8x8xbf16>
      %54 = vector.shape_cast %53 : vector<7x8x8xbf16> to vector<56x8xbf16>
      %c1_57 = arith.constant 1 : index
      %c0_58 = arith.constant 0 : index
      %c0_59 = arith.constant 0 : index
      %55 = vector.load %arg4[%c1_57, %c0_58, %c0_59] : memref<9x8x8xbf16, #tpu.memory_space<vmem>>, vector<1x8x8xbf16>
      %56 = vector.shape_cast %55 : vector<1x8x8xbf16> to vector<8x8xbf16>
      %cst_60 = arith.constant dense<0.000000e+00> : vector<56x8xf32>
      %57 = tpu.matmul %54, %56, %cst_60 {dimension_numbers = #tpu.dot_dimension_numbers<[1], [0], [0], [1], [0, 0, 1, 1], [], []>} : vector<56x8xbf16>, vector<8x8xbf16>, vector<56x8xf32> -> vector<56x8xf32>
      %c1_61 = arith.constant 1 : index
      %c0_62 = arith.constant 0 : index
      %c0_63 = arith.constant 0 : index
      %58 = vector.load %arg10[%c1_61, %c0_62, %c0_63] : memref<8x8x8xf32, #tpu.memory_space<vmem>>, vector<7x8x8xf32>
      %59 = vector.shape_cast %57 : vector<56x8xf32> to vector<7x8x8xf32>
      %60 = arith.addf %58, %59 : vector<7x8x8xf32>
      %c1_64 = arith.constant 1 : index
      %c0_65 = arith.constant 0 : index
      %c0_66 = arith.constant 0 : index
      %61 = vector.load %arg10[%c1_64, %c0_65, %c0_66] : memref<8x8x8xf32, #tpu.memory_space<vmem>>, vector<7x8x8xf32>
      tpu.vector_store %arg10[%c1_64, %c0_65, %c0_66], %60 {strides = array<i32>} : memref<8x8x8xf32, #tpu.memory_space<vmem>>, vector<7x8x8xf32>,
      %62 = vector.shape_cast %52 : vector<8x8x8xbf16> to vector<64x8xbf16>
      %c4 = arith.constant 4 : index
      %c0_67 = arith.constant 0 : index
      %c0_68 = arith.constant 0 : index
      %63 = vector.load %arg4[%c4, %c0_67, %c0_68] : memref<9x8x8xbf16, #tpu.memory_space<vmem>>, vector<1x8x8xbf16>
      %64 = vector.shape_cast %63 : vector<1x8x8xbf16> to vector<8x8xbf16>
      %cst_69 = arith.constant dense<0.000000e+00> : vector<64x8xf32>
      %65 = tpu.matmul %62, %64, %cst_69 {dimension_numbers = #tpu.dot_dimension_numbers<[1], [0], [0], [1], [0, 0, 1, 1], [], []>} : vector<64x8xbf16>, vector<8x8xbf16>, vector<64x8xf32> -> vector<64x8xf32>
      %c0_70 = arith.constant 0 : index
      %c0_71 = arith.constant 0 : index
      %c0_72 = arith.constant 0 : index
      %66 = vector.load %arg10[%c0_70, %c0_71, %c0_72] : memref<8x8x8xf32, #tpu.memory_space<vmem>>, vector<8x8x8xf32>
      %67 = vector.shape_cast %65 : vector<64x8xf32> to vector<8x8x8xf32>
      %68 = arith.addf %66, %67 : vector<8x8x8xf32>
      %c0_73 = arith.constant 0 : index
      %c0_74 = arith.constant 0 : index
      %c0_75 = arith.constant 0 : index
      %69 = vector.load %arg10[%c0_73, %c0_74, %c0_75] : memref<8x8x8xf32, #tpu.memory_space<vmem>>, vector<8x8x8xf32>
      tpu.vector_store %arg10[%c0_73, %c0_74, %c0_75], %68 {strides = array<i32>} : memref<8x8x8xf32, #tpu.memory_space<vmem>>, vector<8x8x8xf32>,
      %70 = vector.extract_strided_slice %52 {offsets = [1, 0, 0], sizes = [7, 8, 8], strides = [1, 1, 1]} : vector<8x8x8xbf16> to vector<7x8x8xbf16>
      %71 = vector.shape_cast %70 : vector<7x8x8xbf16> to vector<56x8xbf16>
      %c7 = arith.constant 7 : index
      %c0_76 = arith.constant 0 : index
      %c0_77 = arith.constant 0 : index
      %72 = vector.load %arg4[%c7, %c0_76, %c0_77] : memref<9x8x8xbf16, #tpu.memory_space<vmem>>, vector<1x8x8xbf16>
      %73 = vector.shape_cast %72 : vector<1x8x8xbf16> to vector<8x8xbf16>
      %cst_78 = arith.constant dense<0.000000e+00> : vector<56x8xf32>
      %74 = tpu.matmul %71, %73, %cst_78 {dimension_numbers = #tpu.dot_dimension_numbers<[1], [0], [0], [1], [0, 0, 1, 1], [], []>} : vector<56x8xbf16>, vector<8x8xbf16>, vector<56x8xf32> -> vector<56x8xf32>
      %c0_79 = arith.constant 0 : index
      %c0_80 = arith.constant 0 : index
      %c0_81 = arith.constant 0 : index
      %75 = vector.load %arg10[%c0_79, %c0_80, %c0_81] : memref<8x8x8xf32, #tpu.memory_space<vmem>>, vector<7x8x8xf32>
      %76 = vector.shape_cast %74 : vector<56x8xf32> to vector<7x8x8xf32>
      %77 = arith.addf %75, %76 : vector<7x8x8xf32>
      %c0_82 = arith.constant 0 : index
      %c0_83 = arith.constant 0 : index
      %c0_84 = arith.constant 0 : index
      %78 = vector.load %arg10[%c0_82, %c0_83, %c0_84] : memref<8x8x8xf32, #tpu.memory_space<vmem>>, vector<7x8x8xf32>
      tpu.vector_store %arg10[%c0_82, %c0_83, %c0_84], %77 {strides = array<i32>} : memref<8x8x8xf32, #tpu.memory_space<vmem>>, vector<7x8x8xf32>,
      %c0_85 = arith.constant 0 : index
      %c0_86 = arith.constant 0 : index
      %c2 = arith.constant 2 : index
      %c0_87 = arith.constant 0 : index
      %79 = vector.load %arg2[%c0_85, %c0_86, %c2, %c0_87] : memref<1x8x10x8xbf16, #tpu.memory_space<vmem>>, vector<1x8x8x8xbf16>
      %80 = vector.shape_cast %79 : vector<1x8x8x8xbf16> to vector<8x8x8xbf16>
      %81 = vector.extract_strided_slice %80 {offsets = [0, 0, 0], sizes = [7, 8, 8], strides = [1, 1, 1]} : vector<8x8x8xbf16> to vector<7x8x8xbf16>
      %82 = vector.shape_cast %81 : vector<7x8x8xbf16> to vector<56x8xbf16>
      %c2_88 = arith.constant 2 : index
      %c0_89 = arith.constant 0 : index
      %c0_90 = arith.constant 0 : index
      %83 = vector.load %arg4[%c2_88, %c0_89, %c0_90] : memref<9x8x8xbf16, #tpu.memory_space<vmem>>, vector<1x8x8xbf16>
      %84 = vector.shape_cast %83 : vector<1x8x8xbf16> to vector<8x8xbf16>
      %cst_91 = arith.constant dense<0.000000e+00> : vector<56x8xf32>
      %85 = tpu.matmul %82, %84, %cst_91 {dimension_numbers = #tpu.dot_dimension_numbers<[1], [0], [0], [1], [0, 0, 1, 1], [], []>} : vector<56x8xbf16>, vector<8x8xbf16>, vector<56x8xf32> -> vector<56x8xf32>
      %c1_92 = arith.constant 1 : index
      %c0_93 = arith.constant 0 : index
      %c0_94 = arith.constant 0 : index
      %86 = vector.load %arg10[%c1_92, %c0_93, %c0_94] : memref<8x8x8xf32, #tpu.memory_space<vmem>>, vector<7x8x8xf32>
      %87 = vector.shape_cast %85 : vector<56x8xf32> to vector<7x8x8xf32>
      %88 = arith.addf %86, %87 : vector<7x8x8xf32>
      %c1_95 = arith.constant 1 : index
      %c0_96 = arith.constant 0 : index
      %c0_97 = arith.constant 0 : index
      %89 = vector.load %arg10[%c1_95, %c0_96, %c0_97] : memref<8x8x8xf32, #tpu.memory_space<vmem>>, vector<7x8x8xf32>
      tpu.vector_store %arg10[%c1_95, %c0_96, %c0_97], %88 {strides = array<i32>} : memref<8x8x8xf32, #tpu.memory_space<vmem>>, vector<7x8x8xf32>,
      %90 = vector.shape_cast %80 : vector<8x8x8xbf16> to vector<64x8xbf16>
      %c5 = arith.constant 5 : index
      %c0_98 = arith.constant 0 : index
      %c0_99 = arith.constant 0 : index
      %91 = vector.load %arg4[%c5, %c0_98, %c0_99] : memref<9x8x8xbf16, #tpu.memory_space<vmem>>, vector<1x8x8xbf16>
      %92 = vector.shape_cast %91 : vector<1x8x8xbf16> to vector<8x8xbf16>
      %cst_100 = arith.constant dense<0.000000e+00> : vector<64x8xf32>
      %93 = tpu.matmul %90, %92, %cst_100 {dimension_numbers = #tpu.dot_dimension_numbers<[1], [0], [0], [1], [0, 0, 1, 1], [], []>} : vector<64x8xbf16>, vector<8x8xbf16>, vector<64x8xf32> -> vector<64x8xf32>
      %c0_101 = arith.constant 0 : index
      %c0_102 = arith.constant 0 : index
      %c0_103 = arith.constant 0 : index
      %94 = vector.load %arg10[%c0_101, %c0_102, %c0_103] : memref<8x8x8xf32, #tpu.memory_space<vmem>>, vector<8x8x8xf32>
      %95 = vector.shape_cast %93 : vector<64x8xf32> to vector<8x8x8xf32>
      %96 = arith.addf %94, %95 : vector<8x8x8xf32>
      %c0_104 = arith.constant 0 : index
      %c0_105 = arith.constant 0 : index
      %c0_106 = arith.constant 0 : index
      %97 = vector.load %arg10[%c0_104, %c0_105, %c0_106] : memref<8x8x8xf32, #tpu.memory_space<vmem>>, vector<8x8x8xf32>
      tpu.vector_store %arg10[%c0_104, %c0_105, %c0_106], %96 {strides = array<i32>} : memref<8x8x8xf32, #tpu.memory_space<vmem>>, vector<8x8x8xf32>,
      %98 = vector.extract_strided_slice %80 {offsets = [1, 0, 0], sizes = [7, 8, 8], strides = [1, 1, 1]} : vector<8x8x8xbf16> to vector<7x8x8xbf16>
      %99 = vector.shape_cast %98 : vector<7x8x8xbf16> to vector<56x8xbf16>
      %c8 = arith.constant 8 : index
      %c0_107 = arith.constant 0 : index
      %c0_108 = arith.constant 0 : index
      %100 = vector.load %arg4[%c8, %c0_107, %c0_108] : memref<9x8x8xbf16, #tpu.memory_space<vmem>>, vector<1x8x8xbf16>
      %101 = vector.shape_cast %100 : vector<1x8x8xbf16> to vector<8x8xbf16>
      %cst_109 = arith.constant dense<0.000000e+00> : vector<56x8xf32>
      %102 = tpu.matmul %99, %101, %cst_109 {dimension_numbers = #tpu.dot_dimension_numbers<[1], [0], [0], [1], [0, 0, 1, 1], [], []>} : vector<56x8xbf16>, vector<8x8xbf16>, vector<56x8xf32> -> vector<56x8xf32>
      %c0_110 = arith.constant 0 : index
      %c0_111 = arith.constant 0 : index
      %c0_112 = arith.constant 0 : index
      %103 = vector.load %arg10[%c0_110, %c0_111, %c0_112] : memref<8x8x8xf32, #tpu.memory_space<vmem>>, vector<7x8x8xf32>
      %104 = vector.shape_cast %102 : vector<56x8xf32> to vector<7x8x8xf32>
      %105 = arith.addf %103, %104 : vector<7x8x8xf32>
      %c0_113 = arith.constant 0 : index
      %c0_114 = arith.constant 0 : index
      %c0_115 = arith.constant 0 : index
      %106 = vector.load %arg10[%c0_113, %c0_114, %c0_115] : memref<8x8x8xf32, #tpu.memory_space<vmem>>, vector<7x8x8xf32>
      tpu.vector_store %arg10[%c0_113, %c0_114, %c0_115], %105 {strides = array<i32>} : memref<8x8x8xf32, #tpu.memory_space<vmem>>, vector<7x8x8xf32>,
      %c0_116 = arith.constant 0 : index
      %c0_117 = arith.constant 0 : index
      %c0_118 = arith.constant 0 : index
      %107 = vector.load %arg10[%c0_116, %c0_117, %c0_118] : memref<8x8x8xf32, #tpu.memory_space<vmem>>, vector<8x8x8xf32>
      %108 = vector.shape_cast %107 : vector<8x8x8xf32> to vector<64x8xf32>
      %c0_119 = arith.constant 0 : index
      %c0_120 = arith.constant 0 : index
      %109 = vector.load %arg7[%c0_119, %c0_120] : memref<1x8xf32, #tpu.memory_space<vmem>>, vector<1x8xf32>
      %110 = vector.broadcast %109 : vector<1x8xf32> to vector<64x8xf32>
      %111 = arith.addf %108, %110 : vector<64x8xf32>
      %cst_121 = arith.constant 0.000000e+00 : f32
      %112 = vector.broadcast %cst_121 : f32 to vector<64x8xf32>
      %113 = arith.maximumf %111, %112 : vector<64x8xf32>
      %114 = arith.truncf %113 : vector<64x8xf32> to vector<64x8xbf16>
      %c0_122 = arith.constant 0 : index
      %c0_123 = arith.constant 0 : index
      %115 = vector.load %arg11[%c0_122, %c0_123] : memref<64x8xbf16, #tpu.memory_space<vmem>>, vector<64x8xbf16>
      tpu.vector_store %arg11[%c0_122, %c0_123], %114 {strides = array<i32>} : memref<64x8xbf16, #tpu.memory_space<vmem>>, vector<64x8xbf16>,
    } else {
    }
    %c0 = arith.constant 0 : index
    %c0_1 = arith.constant 0 : index
    %c0_2 = arith.constant 0 : index
    %c0_3 = arith.constant 0 : index
    %3 = vector.load %arg3[%c0, %c0_1, %c0_2, %c0_3] : memref<1x8x8x4xbf16, #tpu.memory_space<vmem>>, vector<1x8x8x4xbf16>
    %4 = vector.shape_cast %3 : vector<1x8x8x4xbf16> to vector<8x8x4xbf16>
    %5 = vector.shape_cast %4 : vector<8x8x4xbf16> to vector<64x4xbf16>
    %c0_4 = arith.constant 0 : index
    %c0_5 = arith.constant 0 : index
    %6 = vector.load %arg11[%c0_4, %c0_5] : memref<64x8xbf16, #tpu.memory_space<vmem>>, vector<64x8xbf16>
    %c0_6 = arith.constant 0 : index
    %c0_7 = arith.constant 0 : index
    %7 = vector.load %arg5[%c0_6, %c0_7] : memref<8x16xbf16, #tpu.memory_space<vmem>>, vector<8x16xbf16>
    %cst = arith.constant dense<0.000000e+00> : vector<64x16xf32>
    %8 = tpu.matmul %6, %7, %cst {dimension_numbers = #tpu.dot_dimension_numbers<[1], [0], [0], [1], [0, 0, 1, 1], [], []>} : vector<64x8xbf16>, vector<8x16xbf16>, vector<64x16xf32> -> vector<64x16xf32>
    %c0_8 = arith.constant 0 : index
    %c0_9 = arith.constant 0 : index
    %9 = vector.load %arg6[%c0_8, %c0_9] : memref<4x16xbf16, #tpu.memory_space<vmem>>, vector<4x16xbf16>
    %cst_10 = arith.constant dense<0.000000e+00> : vector<64x16xf32>
    %10 = tpu.matmul %5, %9, %cst_10 {dimension_numbers = #tpu.dot_dimension_numbers<[1], [0], [0], [1], [0, 0, 1, 1], [], []>} : vector<64x4xbf16>, vector<4x16xbf16>, vector<64x16xf32> -> vector<64x16xf32>
    %11 = arith.addf %8, %10 : vector<64x16xf32>
    %c0_11 = arith.constant 0 : index
    %c0_12 = arith.constant 0 : index
    %12 = vector.load %arg8[%c0_11, %c0_12] : memref<1x16xf32, #tpu.memory_space<vmem>>, vector<1x16xf32>
    %13 = vector.broadcast %12 : vector<1x16xf32> to vector<64x16xf32>
    %14 = arith.addf %11, %13 : vector<64x16xf32>
    %cst_13 = arith.constant 0.000000e+00 : f32
    %15 = vector.broadcast %cst_13 : f32 to vector<64x16xf32>
    %16 = arith.maximumf %14, %15 : vector<64x16xf32>
    %17 = vector.shape_cast %16 : vector<64x16xf32> to vector<8x8x16xf32>
    %c0_14 = arith.constant 0 : index
    %c0_15 = arith.constant 0 : index
    %c0_16 = arith.constant 0 : index
    %c0_17 = arith.constant 0 : index
    %18 = vector.load %arg9[%c0_14, %c0_15, %c0_16, %c0_17] : memref<1x8x8x16xf32, #tpu.memory_space<vmem>>, vector<1x8x8x16xf32>
    %19 = vector.shape_cast %18 : vector<1x8x8x16xf32> to vector<8x8x16xf32>
    %20 = vector.shape_cast %17 : vector<8x8x16xf32> to vector<1x8x8x16xf32>
    tpu.vector_store %arg9[%c0_14, %c0_15, %c0_16, %c0_17], %20 {strides = array<i32>} : memref<1x8x8x16xf32, #tpu.memory_space<vmem>>, vector<1x8x8x16xf32>,
    return
  }
  func.func @transform_0(%arg0: i32, %arg1: i32) -> (i32, i32, i32, i32) {
    %c0_i32 = arith.constant 0 : i32
    %c0_i32_0 = arith.constant 0 : i32
    %c0_i32_1 = arith.constant 0 : i32
    %c0_i32_2 = arith.constant 0 : i32
    return %arg0, %c0_i32, %c0_i32_0, %c0_i32_1 : i32, i32, i32, i32
  }
  func.func @transform_1(%arg0: i32, %arg1: i32) -> (i32, i32, i32, i32) {
    %c0_i32 = arith.constant 0 : i32
    %c0_i32_0 = arith.constant 0 : i32
    %c0_i32_1 = arith.constant 0 : i32
    %c0_i32_2 = arith.constant 0 : i32
    return %arg0, %c0_i32, %c0_i32_0, %c0_i32_1 : i32, i32, i32, i32
  }
  func.func @transform_2(%arg0: i32, %arg1: i32) -> (i32, i32, i32) {
    %c0_i32 = arith.constant 0 : i32
    %c0_i32_0 = arith.constant 0 : i32
    %c0_i32_1 = arith.constant 0 : i32
    %c0_i32_2 = arith.constant 0 : i32
    return %c0_i32, %c0_i32_0, %c0_i32_1 : i32, i32, i32
  }
  func.func @transform_3(%arg0: i32, %arg1: i32) -> (i32, i32) {
    %c0_i32 = arith.constant 0 : i32
    %c0_i32_0 = arith.constant 0 : i32
    return %c0_i32, %arg1 : i32, i32
  }
  func.func @transform_4(%arg0: i32, %arg1: i32) -> (i32, i32) {
    %c0_i32 = arith.constant 0 : i32
    %c0_i32_0 = arith.constant 0 : i32
    return %c0_i32, %arg1 : i32, i32
  }
  func.func @transform_5(%arg0: i32, %arg1: i32) -> (i32, i32) {
    %c0_i32 = arith.constant 0 : i32
    %c0_i32_0 = arith.constant 0 : i32
    %c0_i32_1 = arith.constant 0 : i32
    return %c0_i32, %c0_i32_0 : i32, i32
  }
  func.func @transform_6(%arg0: i32, %arg1: i32) -> (i32, i32) {
    %c0_i32 = arith.constant 0 : i32
    %c0_i32_0 = arith.constant 0 : i32
    return %c0_i32, %arg1 : i32, i32
  }
  func.func @transform_7(%arg0: i32, %arg1: i32) -> (i32, i32, i32, i32) {
    %c0_i32 = arith.constant 0 : i32
    %c0_i32_0 = arith.constant 0 : i32
    %c0_i32_1 = arith.constant 0 : i32
    return %arg0, %c0_i32, %c0_i32_0, %arg1 : i32, i32, i32, i32
  }
}

</mosaic_0001>

<llo_original>
// kernel: conv_block_forward.2
$region0: #{conv_block_forward.2}
  #allocation0 [shape = 'u32[]', space=smem, size = 0x4, offset = 0x4, fixed_abs, tag = 'smem constant byte address 0x4 - core index']
  #allocation1 [shape = 'u32[72,128]{1,0:T(1,128)}', space=vmem, size = 0x9000, scoped, tag = 'internal scratch']
  %s0 = inlined_call_operand.vmem [shape: f32[2,8,2,8,8], index: 0, kind: input, shape index: {}]
  %s1 = inlined_call_operand.vmem [shape: bf16[4,8], index: 1, kind: input, shape index: {}]
  %s2 = inlined_call_operand.vmem [shape: f32[1,8], index: 2, kind: input, shape index: {}]
  %s3 = inlined_call_operand.vmem [shape: bf16[2,8,10,8], index: 3, kind: output, shape index: {0}]
  %s4 = inlined_call_operand.vmem [shape: bf16[2,8,8,4], index: 4, kind: output, shape index: {1}]
  %5 = xla_tuple %s3, %s4
  %s6 = sld [smem:[#allocation0]]
  $region91: #{conv_block_forward.2} parent=0
    _
  %s8 = ssub.s32 1, %s6
  %s9 = scalar_select 0, %s8, %s6
  $region1: #{conv_block_forward.2} parent=0
    #allocation2 [shape = 'u8[65536]{0}', space=vmem, size = 0x10000, scoped, tag = 'input window, operand 0']
    loop: start=0, step=1, limit=4
    $region2: #{conv_block_forward.2} parent=1 // loop_pre_header
      _
    $region3: #{conv_block_forward.2} parent=1 // loop_header
      %s11 = sphi 0, %s15
      %p12 = scmp.ge.s32.totalorder %s11, 4
      %s18 = sphi 0, %s30
      %s19 = sphi 0, %s26
      %s20 = sphi 0, %s18
      %s21 = sphi 0, %s19
      %s22 = sphi 0, %s20
      %s23 = sphi 0, %s21
      %s35 = sphi 0, %s37
      %s38 = sphi 0, %s35
      %s39 = sphi 0, %s38
      %s55 = sphi 0, %s39
      %s59 = sphi 0, %s59
      %s61 = sphi 0, %s59
      %s62 = sphi 0, %s61
      %s76 = sphi 0, %s62
      %s80 = sphi 0, %s80
      %s82 = sphi 0, %s80
      %s83 = sphi 0, %s82
      %s97 = sphi 0, %s83
      %s105 = sphi 0, %s107
      %s108 = sphi 0, %s105
      %s109 = sphi 0, %s108
      %s125 = sphi 0, %s109
      %s133 = sphi 0, %s135
      %s136 = sphi 0, %s133
      %s137 = sphi 0, %s136
      %s153 = sphi 0, %s137
    $region4: #{conv_block_forward.2} parent=1 // loop_header_branch
      %14 = sbr.rel (%p12) target = $region8
    $region5: #{conv_block_forward.2} parent=1 // loop_body
      %s16 = ssub.s32 %s11, 1
      %s17 = ssub.s32 %s11, 2
      %s24 = sadd.s32 1, %s19
      %p25 = scmp.ge.s32.totalorder %s24, 1
      %s26 = scalar_select %p25, 0, %s24
      %s27 = sadd.s32 1, %s18
      %s28 = scalar_select %p25, %s27, %s18
      %p29 = scmp.ge.s32.totalorder %s28, 2
      %s30 = scalar_select %p29, 0, %s28
      %s31 = ssub.s32 %s18, %s30
      %s32 = ssub.s32 %s19, %s26
      %s33 = sor.u32 %s31, %s32
      %p34 = scmp.eq.s32.totalorder %s33, 0
      %s36 = sadd.s32 %s35, 1
      %s37 = scalar_select %p34, %s35, %s36
      %p40 = pneg %p34
      %p41 = scmp.eq.s32.totalorder %s11, 1
      %p42 = por %p40, %p41
      %p43 = scmp.ne.s32.totalorder %s35, %s38
      %p44 = scmp.eq.s32.totalorder %s11, 0
      %p45 = por %p43, %p44
      %p46 = scmp.ne.s32.totalorder %s35, %s38
      %p47 = scmp.eq.s32.totalorder %s16, 1
      %p48 = por %p46, %p47
      %p49 = scmp.ne.s32.totalorder %s38, %s39
      %p50 = scmp.eq.s32.totalorder %s16, 0
      %p51 = por %p49, %p50
      %p52 = scmp.ne.s32.totalorder %s38, %s39
      %p53 = scmp.eq.s32.totalorder %s17, 1
      %p54 = por %p52, %p53
      %p56 = scmp.ne.s32.totalorder %s39, %s55
      %p57 = scmp.eq.s32.totalorder %s17, 0
      %p58 = por %p56, %p57
      %s60 = sadd.s32 %s59, 1
      %p63 = scmp.eq.s32.totalorder %s11, 1
      %p64 = scmp.ne.s32.totalorder %s59, %s61
      %p65 = scmp.eq.s32.totalorder %s11, 0
      %p66 = por %p64, %p65
      %p67 = scmp.ne.s32.totalorder %s59, %s61
      %p68 = scmp.eq.s32.totalorder %s16, 1
      %p69 = por %p67, %p68
      %p70 = scmp.ne.s32.totalorder %s61, %s62
      %p71 = scmp.eq.s32.totalorder %s16, 0
      %p72 = por %p70, %p71
      %p73 = scmp.ne.s32.totalorder %s61, %s62
      %p74 = scmp.eq.s32.totalorder %s17, 1
      %p75 = por %p73, %p74
      %p77 = scmp.ne.s32.totalorder %s62, %s76
      %p78 = scmp.eq.s32.totalorder %s17, 0
      %p79 = por %p77, %p78
      %s81 = sadd.s32 %s80, 1
      %p84 = scmp.eq.s32.totalorder %s11, 1
      %p85 = scmp.ne.s32.totalorder %s80, %s82
      %p86 = scmp.eq.s32.totalorder %s11, 0
      %p87 = por %p85, %p86
      %p88 = scmp.ne.s32.totalorder %s80, %s82
      %p89 = scmp.eq.s32.totalorder %s16, 1
      %p90 = por %p88, %p89
      %p91 = scmp.ne.s32.totalorder %s82, %s83
      %p92 = scmp.eq.s32.totalorder %s16, 0
      %p93 = por %p91, %p92
      %p94 = scmp.ne.s32.totalorder %s82, %s83
      %p95 = scmp.eq.s32.totalorder %s17, 1
      %p96 = por %p94, %p95
      %p98 = scmp.ne.s32.totalorder %s83, %s97
      %p99 = scmp.eq.s32.totalorder %s17, 0
      %p100 = por %p98, %p99
      %s101 = ssub.s32 %s18, %s30
      %s102 = ssub.s32 %s19, %s26
      %s103 = sor.u32 %s101, %s102
      %p104 = scmp.eq.s32.totalorder %s103, 0
      %s106 = sadd.s32 %s105, 1
      %s107 = scalar_select %p104, %s105, %s106
      %p110 = pneg %p104
      %p111 = scmp.eq.s32.totalorder %s11, 1
      %p112 = por %p110, %p111
      %p113 = scmp.ne.s32.totalorder %s105, %s108
      %p114 = scmp.eq.s32.totalorder %s11, 0
      %p115 = por %p113, %p114
      %p116 = scmp.ne.s32.totalorder %s105, %s108
      %p117 = scmp.eq.s32.totalorder %s16, 1
      %p118 = por %p116, %p117
      %p119 = scmp.ne.s32.totalorder %s108, %s109
      %p120 = scmp.eq.s32.totalorder %s16, 0
      %p121 = por %p119, %p120
      %p122 = scmp.ne.s32.totalorder %s108, %s109
      %p123 = scmp.eq.s32.totalorder %s17, 1
      %p124 = por %p122, %p123
      %p126 = scmp.ne.s32.totalorder %s109, %s125
      %p127 = scmp.eq.s32.totalorder %s17, 0
      %p128 = por %p126, %p127
      %s129 = ssub.s32 %s18, %s30
      %s130 = ssub.s32 %s19, %s26
      %s131 = sor.u32 %s129, %s130
      %p132 = scmp.eq.s32.totalorder %s131, 0
      %s134 = sadd.s32 %s133, 1
      %s135 = scalar_select %p132, %s133, %s134
      %p138 = pneg %p132
      %p139 = scmp.eq.s32.totalorder %s11, 1
      %p140 = por %p138, %p139
      %p141 = scmp.ne.s32.totalorder %s133, %s136
      %p142 = scmp.eq.s32.totalorder %s11, 0
      %p143 = por %p141, %p142
      %p144 = scmp.ne.s32.totalorder %s133, %s136
      %p145 = scmp.eq.s32.totalorder %s16, 1
      %p146 = por %p144, %p145
      %p147 = scmp.ne.s32.totalorder %s136, %s137
      %p148 = scmp.eq.s32.totalorder %s16, 0
      %p149 = por %p147, %p148
      %p150 = scmp.ne.s32.totalorder %s136, %s137
      %p151 = scmp.eq.s32.totalorder %s17, 1
      %p152 = por %p150, %p151
      %p154 = scmp.ne.s32.totalorder %s137, %s153
      %p155 = scmp.eq.s32.totalorder %s17, 0
      %p156 = por %p154, %p155
      %p157 = scmp.le.s32.totalorder 1, %s11
      %p158 = scmp.lt.s32.totalorder %s11, 3
      %p159 = pnand %p157, %p158
      %p160 = pneg %p159
      // Predicated region
      $region9: #{conv_block_forward.2} parent=5 // pred_check
        _
      $region10: #{conv_block_forward.2} parent=5 // pred_check_branch
        %162 = sbr.rel (%p159) target = $region12
      $region11: #{conv_block_forward.2} parent=5 // pred_region
        %s163 = ssub.s32 %s11, 1
        // Predicated region
        $region13: #{conv_block_forward.2} parent=11 // pred_check
          %p164 = pneg %p72
        $region14: #{conv_block_forward.2} parent=11 // pred_check_branch
          %166 = sbr.rel (%p164) target = $region16
        $region15: #{conv_block_forward.2} parent=11 // pred_region
          _
        $region16: #{conv_block_forward.2} parent=11 // pred_fallthru
          _
        // Predicated region
        $region17: #{conv_block_forward.2} parent=11 // pred_check
          %p167 = pneg %p93
        $region18: #{conv_block_forward.2} parent=11 // pred_check_branch
          %169 = sbr.rel (%p167) target = $region20
        $region19: #{conv_block_forward.2} parent=11 // pred_region
          _
        $region20: #{conv_block_forward.2} parent=11 // pred_fallthru
          _
      $region12: #{conv_block_forward.2} parent=5 // pred_fallthru
        _
      %p170 = scmp.lt.s32.totalorder %s11, 2
      // Predicated region
      $region21: #{conv_block_forward.2} parent=5 // pred_check
        %p171 = pneg %p170
      $region22: #{conv_block_forward.2} parent=5 // pred_check_branch
        %173 = sbr.rel (%p171) target = $region24
      $region23: #{conv_block_forward.2} parent=5 // pred_region
        // Predicated region
        $region25: #{conv_block_forward.2} parent=23 // pred_check
          %p174 = pneg %p45
        $region26: #{conv_block_forward.2} parent=23 // pred_check_branch
          %176 = sbr.rel (%p174) target = $region28
        $region27: #{conv_block_forward.2} parent=23 // pred_region
          %s177 = sand.u32 %s35, 1
          %s178 = sand.u32 %s35, 1
          %s179 = smul.addr %s178, 64
          %s180 = scalar_lea.vmem [#allocation2], %s179
          %s181 = smul.u32 8, %s19
          %s182 = smul.addr %s181, 2
          %s183 = smul.addr %s18, 16
          %s184 = sadd.s32 %s182, %s183
          %s185 = smul.addr %s184, 8
          %s186 = scalar_lea.vmem %s0, %s185
          // Predicated region
          $region29: #{conv_block_forward.2} parent=27 // pred_check
            _
          $region30: #{conv_block_forward.2} parent=27 // pred_check_branch
            %188 = sbr.rel (0) target = $region32
          $region31: #{conv_block_forward.2} parent=27 // pred_region
            // Predicated region
            $region33: #{conv_block_forward.2} parent=31 // pred_check
              _
            $region34: #{conv_block_forward.2} parent=31 // pred_check_branch
              %190 = sbr.rel (0) target = $region36
            $region35: #{conv_block_forward.2} parent=31 // pred_region
              // Predicated region
              $region48: #{conv_block_forward.2} parent=35 // pred_check
                _
              $region49: #{conv_block_forward.2} parent=35 // pred_check_branch
                %220 = sbr.rel (0) target = $region51
              $region50: #{conv_block_forward.2} parent=35 // pred_region
                loop: start=0, step=1, limit=1
                $region52: #{conv_block_forward.2} parent=50 // loop_pre_header
                  _
                $region53: #{conv_block_forward.2} parent=50 // loop_header
                  %s222 = sphi 0, %s226
                  %p223 = scmp.ge.s32.totalorder %s222, 1
                  %s227 = sphi %s186, %s186
                  %s228 = sphi %s180, %s180
                $region54: #{conv_block_forward.2} parent=50 // loop_header_branch
                  %225 = sbr.rel (%p223) target = $region58
                $region55: #{conv_block_forward.2} parent=50 // loop_body
                  %v229 = vld [vmem:[%s227] sm:$0xff]
                  %230 = vst [vmem:[%s228] sm:$0xff] %v229
                  %v231 = vld [vmem:[%s227 + $0x10] sm:$0xff]
                  %232 = vst [vmem:[%s228 + $0x8] sm:$0xff] %v231
                  %v233 = vld [vmem:[%s227 + $0x20] sm:$0xff]
                  %234 = vst [vmem:[%s228 + $0x10] sm:$0xff] %v233
                  %v235 = vld [vmem:[%s227 + $0x30] sm:$0xff]
                  %236 = vst [vmem:[%s228 + $0x18] sm:$0xff] %v235
                  %v237 = vld [vmem:[%s227 + $0x40] sm:$0xff]
                  %238 = vst [vmem:[%s228 + $0x20] sm:$0xff] %v237
                  %v239 = vld [vmem:[%s227 + $0x50] sm:$0xff]
                  %240 = vst [vmem:[%s228 + $0x28] sm:$0xff] %v239
                  %v241 = vld [vmem:[%s227 + $0x60] sm:$0xff]
                  %242 = vst [vmem:[%s228 + $0x30] sm:$0xff] %v241
                  %v243 = vld [vmem:[%s227 + $0x70] sm:$0xff]
                  %244 = vst [vmem:[%s228 + $0x38] sm:$0xff] %v243
                $region56: #{conv_block_forward.2} parent=50 // loop_footer
                  %s226 = sadd.s32 1, %s222
                $region57: #{conv_block_forward.2} parent=50 // loop_footer_branch
                  %221 = sbr.rel target = $region53
                $region58: #{conv_block_forward.2} parent=50 // loop_exit
                  _
              $region51: #{conv_block_forward.2} parent=35 // pred_fallthru
                _
              // Predicated region
              $region59: #{conv_block_forward.2} parent=35 // pred_check
                _
              $region60: #{conv_block_forward.2} parent=35 // pred_check_branch
                %246 = sbr.rel target = $region62
              $region61: #{conv_block_forward.2} parent=35 // pred_region
                _
              $region62: #{conv_block_forward.2} parent=35 // pred_fallthru
                _
            $region36: #{conv_block_forward.2} parent=31 // pred_fallthru
              _
            // Predicated region
            $region37: #{conv_block_forward.2} parent=31 // pred_check
              _
            $region38: #{conv_block_forward.2} parent=31 // pred_check_branch
              %192 = sbr.rel target = $region40
            $region39: #{conv_block_forward.2} parent=31 // pred_region
              %s194 = ssub.s32 256, 1
              loop: start=0, step=1, limit=1
              $region41: #{conv_block_forward.2} parent=39 // loop_pre_header
                _
              $region42: #{conv_block_forward.2} parent=39 // loop_header
                %s196 = sphi 0, %s200
                %p197 = scmp.ge.s32.totalorder %s196, 1
                %s201 = sphi %s186, %s186
                %s202 = sphi %s180, %s180
              $region43: #{conv_block_forward.2} parent=39 // loop_header_branch
                %199 = sbr.rel (%p197) target = $region47
              $region44: #{conv_block_forward.2} parent=39 // loop_body
                %v203 = vld [vmem:[%s201] sm:%s194]
                %204 = vst [vmem:[%s202] sm:%s194] %v203
                %v205 = vld [vmem:[%s201 + $0x10] sm:%s194]
                %206 = vst [vmem:[%s202 + $0x8] sm:%s194] %v205
                %v207 = vld [vmem:[%s201 + $0x20] sm:%s194]
                %208 = vst [vmem:[%s202 + $0x10] sm:%s194] %v207
                %v209 = vld [vmem:[%s201 + $0x30] sm:%s194]
                %210 = vst [vmem:[%s202 + $0x18] sm:%s194] %v209
                %v211 = vld [vmem:[%s201 + $0x40] sm:%s194]
                %212 = vst [vmem:[%s202 + $0x20] sm:%s194] %v211
                %v213 = vld [vmem:[%s201 + $0x50] sm:%s194]
                %214 = vst [vmem:[%s202 + $0x28] sm:%s194] %v213
                %v215 = vld [vmem:[%s201 + $0x60] sm:%s194]
                %216 = vst [vmem:[%s202 + $0x30] sm:%s194] %v215
                %v217 = vld [vmem:[%s201 + $0x70] sm:%s194]
                %218 = vst [vmem:[%s202 + $0x38] sm:%s194] %v217
              $region45: #{conv_block_forward.2} parent=39 // loop_footer
                %s200 = sadd.s32 1, %s196
              $region46: #{conv_block_forward.2} parent=39 // loop_footer_branch
                %195 = sbr.rel target = $region42
              $region47: #{conv_block_forward.2} parent=39 // loop_exit
                _
            $region40: #{conv_block_forward.2} parent=31 // pred_fallthru
              _
          $region32: #{conv_block_forward.2} parent=27 // pred_fallthru
            _
          %247 = vnop
        $region28: #{conv_block_forward.2} parent=23 // pred_fallthru
          _
      $region24: #{conv_block_forward.2} parent=5 // pred_fallthru
        _
      %p248 = scmp.le.s32.totalorder 1, %s11
      %p249 = scmp.lt.s32.totalorder %s11, 3
      %p250 = pnand %p248, %p249
      %p251 = pneg %p250
      // Predicated region
      $region63: #{conv_block_forward.2} parent=5 // pred_check
        _
      $region64: #{conv_block_forward.2} parent=5 // pred_check_branch
        %253 = sbr.rel (%p250) target = $region66
      $region65: #{conv_block_forward.2} parent=5 // pred_region
        %s254 = ssub.s32 %s11, 1
        %s255 = sand.u32 %s38, 1
        %s256 = sand.u32 %s38, 1
        %s257 = smul.addr %s256, 64
        %s258 = scalar_lea.vmem [#allocation2], %s257
        // Predicated region
        $region67: #{conv_block_forward.2} parent=65 // pred_check
          %p259 = pneg %p51
        $region68: #{conv_block_forward.2} parent=65 // pred_check_branch
          %261 = sbr.rel (%p259) target = $region70
        $region69: #{conv_block_forward.2} parent=65 // pred_region
          _
        $region70: #{conv_block_forward.2} parent=65 // pred_fallthru
          _
        %s262 = sand.u32 %s38, 1
        %s263 = sand.u32 %s38, 1
        %s264 = smul.addr %s263, 64
        %s265 = scalar_lea.vmem [#allocation2], %s264
        %p266 = pneg %p51
        %p267 = pneg %p48
        %p268 = pneg %p72
        %p269 = pneg %p69
        %p270 = pneg %p93
        %p271 = pneg %p90
        %p272 = pneg %p121
        %p273 = pneg %p118
        %s274 = smul.u32 8, %s21
        %p275 = scmp.lt.s32.totalorder %s20, 1
        %s276 = scalar_select %p275, %s20, 1
        %p277 = scmp.lt.s32.totalorder %s274, 7
        %s278 = scalar_select %p277, %s274, 7
        %s279 = smul.addr %s278, 2
        %s280 = smul.addr %s276, 16
        %s281 = sadd.s32 %s279, %s280
        %s282 = smul.addr %s281, 4
        %s283 = scalar_lea.vmem %s3, %s282
        %p284 = pneg %p149
        %p285 = pneg %p146
        %s286 = smul.u32 8, %s21
        %p287 = scmp.lt.s32.totalorder %s20, 1
        %s288 = scalar_select %p287, %s20, 1
        %p289 = scmp.lt.s32.totalorder %s286, 7
        %s290 = scalar_select %p289, %s286, 7
        %s291 = smul.addr %s288, 8
        %s292 = sadd.s32 %s290, %s291
        %s293 = smul.addr %s292, 4
        %s294 = scalar_lea.vmem %s4, %s293
        %s295 = smul.u32 8, %s21
        %s296 = smul.u32 8, %s21
        %p297 = scmp.lt.s32.totalorder %s20, 1
        %s298 = scalar_select %p297, %s20, 1
        %p299 = scmp.lt.s32.totalorder %s296, 7
        %s300 = scalar_select %p299, %s296, 7
        %s301 = smul.addr %s300, 2
        %s302 = smul.addr %s298, 16
        %s303 = sadd.s32 %s301, %s302
        %s304 = smul.addr %s303, 4
        %s305 = scalar_lea.vmem %s3, %s304
        %s306 = smul.u32 8, %s21
        %s307 = smul.u32 8, %s21
        %p308 = scmp.lt.s32.totalorder %s20, 1
        %s309 = scalar_select %p308, %s20, 1
        %p310 = scmp.lt.s32.totalorder %s307, 7
        %s311 = scalar_select %p310, %s307, 7
        %s312 = smul.addr %s309, 8
        %s313 = sadd.s32 %s311, %s312
        %s314 = smul.addr %s313, 4
        %s315 = scalar_lea.vmem %s4, %s314
        %s316 = smul.u32 8, %s21
        %v318 = vld [vmem:[%s258] sm:$0xff]
        %v319 = vld [vmem:[%s258 + $0x8] sm:$0xff]
        %v320 = vld [vmem:[%s258 + $0x10] sm:$0xff]
        %v321 = vld [vmem:[%s258 + $0x18] sm:$0xff]
        %v322 = vld [vmem:[%s258 + $0x20] sm:$0xff]
        %v323 = vld [vmem:[%s258 + $0x28] sm:$0xff]
        %v324 = vld [vmem:[%s258 + $0x30] sm:$0xff]
        %v325 = vld [vmem:[%s258 + $0x38] sm:$0xff]
        %v326 = vpack.c.bf16 %v318, %v318
        %v327 = vpack.c.bf16 %v319, %v319
        %v328 = vpack.c.bf16 %v320, %v320
        %v329 = vpack.c.bf16 %v321, %v321
        %v330 = vpack.c.bf16 %v322, %v322
        %v331 = vpack.c.bf16 %v323, %v323
        %v332 = vpack.c.bf16 %v324, %v324
        %v333 = vpack.c.bf16 %v325, %v325
        %vm334 = vcmask 27648
        %335 = vst.msk [vmem:[%s315] sm:$0xf] %vm334, %v326
        %336 = vst.msk [vmem:[%s315 + $0x4] sm:$0xf] %vm334, %v327
        %337 = vst.msk [vmem:[%s315 + $0x8] sm:$0xf] %vm334, %v328
        %338 = vst.msk [vmem:[%s315 + $0xc] sm:$0xf] %vm334, %v329
        %339 = vst.msk [vmem:[%s315 + $0x10] sm:$0xf] %vm334, %v330
        %340 = vst.msk [vmem:[%s315 + $0x14] sm:$0xf] %vm334, %v331
        %341 = vst.msk [vmem:[%s315 + $0x18] sm:$0xf] %vm334, %v332
        %342 = vst.msk [vmem:[%s315 + $0x1c] sm:$0xf] %vm334, %v333
        %v343 = vld [vmem:[%s1] sm:$0x3]
        %v344 = vld [vmem:[%s2] sm:$0x1]
        %v346 = vperm.slane %v344, 0
        %v356 = vunpack.c.l.b16 %v326
        %v357 = vunpack.c.l.b16 %v327
        %v358 = vunpack.c.l.b16 %v328
        %v359 = vunpack.c.l.b16 %v329
        %v360 = vunpack.c.l.b16 %v330
        %v361 = vunpack.c.l.b16 %v331
        %v362 = vunpack.c.l.b16 %v332
        %v363 = vunpack.c.l.b16 %v333
        %v364 = vpack.c.b16 %v357, %v356
        %v365 = vpack.c.b16 %v359, %v358
        %v366 = vpack.c.b16 %v361, %v360
        %v367 = vpack.c.b16 %v363, %v362
        %vm368 = vcmask 31744
        %v370 = vsel %vm368, %v364, 0
        %v373 = vsel %vm368, %v365, 0
        %v376 = vsel %vm368, %v366, 0
        %v379 = vsel %vm368, %v367, 0
        %vm381 = vcmask 1041408
        %v383 = vsel %vm381, %v343, 0
        %385 = vmatpush.bf16.msra.mxu0 0
        %386 = vmatpush.bf16.msra.mxu0 0
        %387 = vmatpush.bf16.msra.mxu0 0
        %388 = vmatpush.bf16.msra.mxu0 0
        %389 = vmatpush.bf16.msra.mxu0 0
        %390 = vmatpush.bf16.msra.mxu0 0
        %391 = vmatpush.bf16.msra.mxu0 0
        %392 = vmatpush.bf16.msra.mxu0 %v383
        %393 = vmatmul.bf16.gmra.mxu0 %v370
        %v394 = vpop.f32.mrf.mxu0
        %v395 = vadd.f32 %v346, %v394
        %v396 = vpop.f32.mrf.mxu0
        %v397 = vadd.f32 %v346, %v396
        %398 = vmatmul.bf16.gmra.mxu0 %v373
        %v399 = vpop.f32.mrf.mxu0
        %v400 = vadd.f32 %v346, %v399
        %v401 = vpop.f32.mrf.mxu0
        %v402 = vadd.f32 %v346, %v401
        %403 = vmatmul.bf16.gmra.mxu0 %v376
        %v404 = vpop.f32.mrf.mxu0
        %v405 = vadd.f32 %v346, %v404
        %v406 = vpop.f32.mrf.mxu0
        %v407 = vadd.f32 %v346, %v406
        %408 = vmatmul.bf16.gmra.mxu0 %v379
        %v409 = vpop.f32.mrf.mxu0
        %v410 = vadd.f32 %v346, %v409
        %v411 = vpop.f32.mrf.mxu0
        %v412 = vadd.f32 %v346, %v411
        %413 = vdwg.mxu0
        %v414 = vmax.f32 %v395, 0.0
        %v415 = vmax.f32 %v397, 0.0
        %v416 = vmax.f32 %v400, 0.0
        %v417 = vmax.f32 %v402, 0.0
        %v418 = vmax.f32 %v405, 0.0
        %v419 = vmax.f32 %v407, 0.0
        %v420 = vmax.f32 %v410, 0.0
        %v421 = vmax.f32 %v412, 0.0
        %v422 = vpack.c.bf16 %v414, %v414
        %v423 = vpack.c.bf16 %v415, %v415
        %v424 = vpack.c.bf16 %v416, %v416
        %v425 = vpack.c.bf16 %v417, %v417
        %v426 = vpack.c.bf16 %v418, %v418
        %v427 = vpack.c.bf16 %v419, %v419
        %v428 = vpack.c.bf16 %v420, %v420
        %v429 = vpack.c.bf16 %v421, %v421
        %v431 = vshrl.u32 %v422, 16
        %v433 = vrot.slane %v431, 7
        %v434 = vshll.u32 %v422, 16
        %v436 = vor.u32 %v433, %v434
        %v437 = vrot.slane %v433, 4
        %v439 = vshrl.u32 %v423, 16
        %v441 = vrot.slane %v439, 7
        %v442 = vshll.u32 %v423, 16
        %v444 = vor.u32 %v441, %v442
        %v445 = vrot.slane %v441, 4
        %v447 = vshrl.u32 %v424, 16
        %v449 = vrot.slane %v447, 7
        %v450 = vshll.u32 %v424, 16
        %v452 = vor.u32 %v449, %v450
        %v453 = vrot.slane %v449, 4
        %v455 = vshrl.u32 %v425, 16
        %v457 = vrot.slane %v455, 7
        %v458 = vshll.u32 %v425, 16
        %v460 = vor.u32 %v457, %v458
        %v461 = vrot.slane %v457, 4
        %v463 = vshrl.u32 %v426, 16
        %v465 = vrot.slane %v463, 7
        %v466 = vshll.u32 %v426, 16
        %v468 = vor.u32 %v465, %v466
        %v469 = vrot.slane %v465, 4
        %v471 = vshrl.u32 %v427, 16
        %v473 = vrot.slane %v471, 7
        %v474 = vshll.u32 %v427, 16
        %v476 = vor.u32 %v473, %v474
        %v477 = vrot.slane %v473, 4
        %v479 = vshrl.u32 %v428, 16
        %v481 = vrot.slane %v479, 7
        %v482 = vshll.u32 %v428, 16
        %v484 = vor.u32 %v481, %v482
        %v485 = vrot.slane %v481, 4
        %v487 = vshrl.u32 %v429, 16
        %v489 = vrot.slane %v487, 7
        %v490 = vshll.u32 %v429, 16
        %v492 = vor.u32 %v489, %v490
        %v493 = vrot.slane %v489, 4
        %vm510 = vcmask 60416
        %vm511 = vsmask.f32 7938
        %vm512 = vmand %vm510, %vm511
        %v513 = vld [vmem:[%s305] sm:$0xf]
        %v514 = vsel %vm512, %v436, %v513
        %515 = vst [vmem:[%s305] sm:$0xf] %v514
        %vm516 = vcmask 57344
        %vm517 = vsmask.f32 256
        %vm518 = vmand %vm516, %vm517
        %v519 = vld [vmem:[%s305 + $0x4] sm:$0x1]
        %v520 = vsel %vm518, %v437, %v519
        %521 = vst [vmem:[%s305 + $0x4] sm:$0x1] %v520
        %v522 = vld [vmem:[%s305 + $0x8] sm:$0xf]
        %v523 = vsel %vm512, %v444, %v522
        %524 = vst [vmem:[%s305 + $0x8] sm:$0xf] %v523
        %v525 = vld [vmem:[%s305 + $0xc] sm:$0x1]
        %v526 = vsel %vm518, %v445, %v525
        %527 = vst [vmem:[%s305 + $0xc] sm:$0x1] %v526
        %v528 = vld [vmem:[%s305 + $0x10] sm:$0xf]
        %v529 = vsel %vm512, %v452, %v528
        %530 = vst [vmem:[%s305 + $0x10] sm:$0xf] %v529
        %v531 = vld [vmem:[%s305 + $0x14] sm:$0x1]
        %v532 = vsel %vm518, %v453, %v531
        %533 = vst [vmem:[%s305 + $0x14] sm:$0x1] %v532
        %v534 = vld [vmem:[%s305 + $0x18] sm:$0xf]
        %v535 = vsel %vm512, %v460, %v534
        %536 = vst [vmem:[%s305 + $0x18] sm:$0xf] %v535
        %v537 = vld [vmem:[%s305 + $0x1c] sm:$0x1]
        %v538 = vsel %vm518, %v461, %v537
        %539 = vst [vmem:[%s305 + $0x1c] sm:$0x1] %v538
        %v540 = vld [vmem:[%s305 + $0x20] sm:$0xf]
        %v541 = vsel %vm512, %v468, %v540
        %542 = vst [vmem:[%s305 + $0x20] sm:$0xf] %v541
        %v543 = vld [vmem:[%s305 + $0x24] sm:$0x1]
        %v544 = vsel %vm518, %v469, %v543
        %545 = vst [vmem:[%s305 + $0x24] sm:$0x1] %v544
        %v546 = vld [vmem:[%s305 + $0x28] sm:$0xf]
        %v547 = vsel %vm512, %v476, %v546
        %548 = vst [vmem:[%s305 + $0x28] sm:$0xf] %v547
        %v549 = vld [vmem:[%s305 + $0x2c] sm:$0x1]
        %v550 = vsel %vm518, %v477, %v549
        %551 = vst [vmem:[%s305 + $0x2c] sm:$0x1] %v550
        %v552 = vld [vmem:[%s305 + $0x30] sm:$0xf]
        %v553 = vsel %vm512, %v484, %v552
        %554 = vst [vmem:[%s305 + $0x30] sm:$0xf] %v553
        %v555 = vld [vmem:[%s305 + $0x34] sm:$0x1]
        %v556 = vsel %vm518, %v485, %v555
        %557 = vst [vmem:[%s305 + $0x34] sm:$0x1] %v556
        %v558 = vld [vmem:[%s305 + $0x38] sm:$0xf]
        %v559 = vsel %vm512, %v492, %v558
        %560 = vst [vmem:[%s305 + $0x38] sm:$0xf] %v559
        %v561 = vld [vmem:[%s305 + $0x3c] sm:$0x1]
        %v562 = vsel %vm518, %v493, %v561
        %563 = vst [vmem:[%s305 + $0x3c] sm:$0x1] %v562
        %v564 = vld [vmem:[%s305] sm:$0x1]
        %v565 = vsel %vm518, 0, %v564
        %566 = vst [vmem:[%s305] sm:$0x1] %v565
        %v567 = vld [vmem:[%s305 + $0x8] sm:$0x1]
        %v568 = vsel %vm518, 0, %v567
        %569 = vst [vmem:[%s305 + $0x8] sm:$0x1] %v568
        %v570 = vld [vmem:[%s305 + $0x10] sm:$0x1]
        %v571 = vsel %vm518, 0, %v570
        %572 = vst [vmem:[%s305 + $0x10] sm:$0x1] %v571
        %v573 = vld [vmem:[%s305 + $0x18] sm:$0x1]
        %v574 = vsel %vm518, 0, %v573
        %575 = vst [vmem:[%s305 + $0x18] sm:$0x1] %v574
        %v576 = vld [vmem:[%s305 + $0x20] sm:$0x1]
        %v577 = vsel %vm518, 0, %v576
        %578 = vst [vmem:[%s305 + $0x20] sm:$0x1] %v577
        %v579 = vld [vmem:[%s305 + $0x28] sm:$0x1]
        %v580 = vsel %vm518, 0, %v579
        %581 = vst [vmem:[%s305 + $0x28] sm:$0x1] %v580
        %v582 = vld [vmem:[%s305 + $0x30] sm:$0x1]
        %v583 = vsel %vm518, 0, %v582
        %584 = vst [vmem:[%s305 + $0x30] sm:$0x1] %v583
        %v585 = vld [vmem:[%s305 + $0x38] sm:$0x1]
        %v586 = vsel %vm518, 0, %v585
        %587 = vst [vmem:[%s305 + $0x38] sm:$0x1] %v586
        %vm588 = vmand %vm516, %vm511
        %v589 = vld [vmem:[%s305 + $0x4] sm:$0x1]
        %v590 = vsel %vm588, 0, %v589
        %591 = vst [vmem:[%s305 + $0x4] sm:$0x1] %v590
        %v592 = vld [vmem:[%s305 + $0xc] sm:$0x1]
        %v593 = vsel %vm588, 0, %v592
        %594 = vst [vmem:[%s305 + $0xc] sm:$0x1] %v593
        %v595 = vld [vmem:[%s305 + $0x14] sm:$0x1]
        %v596 = vsel %vm588, 0, %v595
        %597 = vst [vmem:[%s305 + $0x14] sm:$0x1] %v596
        %v598 = vld [vmem:[%s305 + $0x1c] sm:$0x1]
        %v599 = vsel %vm588, 0, %v598
        %600 = vst [vmem:[%s305 + $0x1c] sm:$0x1] %v599
        %v601 = vld [vmem:[%s305 + $0x24] sm:$0x1]
        %v602 = vsel %vm588, 0, %v601
        %603 = vst [vmem:[%s305 + $0x24] sm:$0x1] %v602
        %v604 = vld [vmem:[%s305 + $0x2c] sm:$0x1]
        %v605 = vsel %vm588, 0, %v604
        %606 = vst [vmem:[%s305 + $0x2c] sm:$0x1] %v605
        %v607 = vld [vmem:[%s305 + $0x34] sm:$0x1]
        %v608 = vsel %vm588, 0, %v607
        %609 = vst [vmem:[%s305 + $0x34] sm:$0x1] %v608
        %v610 = vld [vmem:[%s305 + $0x3c] sm:$0x1]
        %v611 = vsel %vm588, 0, %v610
        %612 = vst [vmem:[%s305 + $0x3c] sm:$0x1] %v611
        %s613 = smul.u32 8, %s21
        %p614 = scmp.lt.s32.totalorder %s20, 1
        %s615 = scalar_select %p614, %s20, 1
        %p616 = scmp.lt.s32.totalorder %s613, 7
        %s617 = scalar_select %p616, %s613, 7
        %s618 = smul.addr %s617, 2
        %s619 = smul.addr %s615, 16
        %s620 = sadd.s32 %s618, %s619
        %s621 = smul.addr %s620, 4
        %s622 = scalar_lea.vmem %s3, %s621
        %s623 = smul.u32 8, %s21
        %p624 = scmp.lt.s32.totalorder %s20, 1
        %s625 = scalar_select %p624, %s20, 1
        %p626 = scmp.lt.s32.totalorder %s623, 7
        %s627 = scalar_select %p626, %s623, 7
        %s628 = smul.addr %s625, 8
        %s629 = sadd.s32 %s627, %s628
        %s630 = smul.addr %s629, 4
        %s631 = scalar_lea.vmem %s4, %s630
        // Predicated region
        $region71: #{conv_block_forward.2} parent=65 // pred_check
          %p632 = pneg %p118
        $region72: #{conv_block_forward.2} parent=65 // pred_check_branch
          %634 = sbr.rel (%p632) target = $region74
        $region73: #{conv_block_forward.2} parent=65 // pred_region
          %s635 = smul.u32 8, %s21
        $region74: #{conv_block_forward.2} parent=65 // pred_fallthru
          _
        // Predicated region
        $region75: #{conv_block_forward.2} parent=65 // pred_check
          %p636 = pneg %p146
        $region76: #{conv_block_forward.2} parent=65 // pred_check_branch
          %638 = sbr.rel (%p636) target = $region78
        $region77: #{conv_block_forward.2} parent=65 // pred_region
          %s639 = smul.u32 8, %s21
        $region78: #{conv_block_forward.2} parent=65 // pred_fallthru
          _
      $region66: #{conv_block_forward.2} parent=5 // pred_fallthru
        _
      %p640 = scmp.le.s32.totalorder 2, %s11
      // Predicated region
      $region79: #{conv_block_forward.2} parent=5 // pred_check
        %p641 = pneg %p640
      $region80: #{conv_block_forward.2} parent=5 // pred_check_branch
        %643 = sbr.rel (%p641) target = $region82
      $region81: #{conv_block_forward.2} parent=5 // pred_region
        %s644 = ssub.s32 %s11, 2
        // Predicated region
        $region83: #{conv_block_forward.2} parent=81 // pred_check
          %p645 = pneg %p124
        $region84: #{conv_block_forward.2} parent=81 // pred_check_branch
          %647 = sbr.rel (%p645) target = $region86
        $region85: #{conv_block_forward.2} parent=81 // pred_region
          %s648 = smul.u32 8, %s23
          %p649 = scmp.lt.s32.totalorder %s22, 1
          %s650 = scalar_select %p649, %s22, 1
          %p651 = scmp.lt.s32.totalorder %s648, 7
          %s652 = scalar_select %p651, %s648, 7
          %s653 = smul.addr %s652, 2
          %s654 = smul.addr %s650, 16
          %s655 = sadd.s32 %s653, %s654
          %s656 = smul.addr %s655, 4
          %s657 = scalar_lea.vmem %s3, %s656
        $region86: #{conv_block_forward.2} parent=81 // pred_fallthru
          _
        // Predicated region
        $region87: #{conv_block_forward.2} parent=81 // pred_check
          %p658 = pneg %p152
        $region88: #{conv_block_forward.2} parent=81 // pred_check_branch
          %660 = sbr.rel (%p658) target = $region90
        $region89: #{conv_block_forward.2} parent=81 // pred_region
          %s661 = smul.u32 8, %s23
          %p662 = scmp.lt.s32.totalorder %s22, 1
          %s663 = scalar_select %p662, %s22, 1
          %p664 = scmp.lt.s32.totalorder %s661, 7
          %s665 = scalar_select %p664, %s661, 7
          %s666 = smul.addr %s663, 8
          %s667 = sadd.s32 %s665, %s666
          %s668 = smul.addr %s667, 4
          %s669 = scalar_lea.vmem %s4, %s668
        $region90: #{conv_block_forward.2} parent=81 // pred_fallthru
          _
      $region82: #{conv_block_forward.2} parent=5 // pred_fallthru
        _
    $region6: #{conv_block_forward.2} parent=1 // loop_footer
      %s15 = sadd.s32 1, %s11
    $region7: #{conv_block_forward.2} parent=1 // loop_footer_branch
      %10 = sbr.rel target = $region3
    $region8: #{conv_block_forward.2} parent=1 // loop_exit
      _

// kernel: conv_block_forward.3
$region0: #{conv_block_forward.3}
  #allocation0 [shape = 'u32[]', space=smem, size = 0x4, offset = 0x4, fixed_abs, tag = 'smem constant byte address 0x4 - core index']
  #allocation1 [shape = 'u32[72,128]{1,0:T(1,128)}', space=vmem, size = 0x9000, scoped, tag = 'internal scratch']
  #allocation2 [shape = 'f32[8,8,8]{2,1,0:T(8,128)}', space=vmem, size = 0x8000, scoped, tag = 'scratch operand']
  #allocation3 [shape = 'bf16[64,8]{1,0:T(8,128)(2,1)}', space=vmem, size = 0x4000, scoped, tag = 'scratch operand']
  %s0 = inlined_call_operand.vmem [shape: bf16[2,8,10,8], index: 0, kind: input, shape index: {}]
  %s1 = inlined_call_operand.vmem [shape: bf16[2,8,8,4], index: 1, kind: input, shape index: {}]
  %s2 = inlined_call_operand.vmem [shape: bf16[9,8,8], index: 2, kind: input, shape index: {}]
  %s3 = inlined_call_operand.vmem [shape: bf16[8,16], index: 3, kind: input, shape index: {}]
  %s4 = inlined_call_operand.vmem [shape: bf16[4,16], index: 4, kind: input, shape index: {}]
  %s5 = inlined_call_operand.vmem [shape: f32[1,8], index: 5, kind: input, shape index: {}]
  %s6 = inlined_call_operand.vmem [shape: f32[1,16], index: 6, kind: input, shape index: {}]
  %s7 = inlined_call_operand.hbm [shape: f32[2,8,8,16], index: 7, kind: output, shape index: {}]
  %s8 = sld [smem:[#allocation0]]
  $region65: #{conv_block_forward.3} parent=0
    _
  %s10 = ssub.s32 1, %s8
  %s11 = scalar_select 0, %s10, %s8
  $region1: #{conv_block_forward.3} parent=0
    #allocation4 [shape = 'u8[65536]{0}', space=vmem, size = 0x10000, scoped, tag = 'output window, operand 0']
    #allocation5 [shape = 's32[2]{0}', space=sflag, size = 0x8, scoped, tag = 'scoped memory for conv_block_forward.3']
    %12 = vsyncpa [#allocation5], 0
    %s13 = scalar_lea.sflag [#allocation5], 1
    %14 = vsyncpa %s13, 0
    loop: start=0, step=1, limit=4
    $region2: #{conv_block_forward.3} parent=1 // loop_pre_header
      _
    $region3: #{conv_block_forward.3} parent=1 // loop_header
      %s16 = sphi 0, %s20
      %p17 = scmp.ge.s32.totalorder %s16, 4
      %s23 = sphi 0, %s35
      %s24 = sphi 0, %s31
      %s25 = sphi 0, %s23
      %s26 = sphi 0, %s24
      %s27 = sphi 0, %s25
      %s28 = sphi 0, %s26
      %s38 = sphi 0, %s40
      %s41 = sphi 0, %s38
      %s42 = sphi 0, %s41
      %s58 = sphi 0, %s42
      %s64 = sphi 0, %s66
      %s67 = sphi 0, %s64
      %s68 = sphi 0, %s67
      %s84 = sphi 0, %s68
      %s88 = sphi 0, %s88
      %s90 = sphi 0, %s88
      %s91 = sphi 0, %s90
      %s105 = sphi 0, %s91
      %s111 = sphi 0, %s113
      %s114 = sphi 0, %s111
      %s115 = sphi 0, %s114
      %s131 = sphi 0, %s115
      %s137 = sphi 0, %s139
      %s140 = sphi 0, %s137
      %s141 = sphi 0, %s140
      %s157 = sphi 0, %s141
      %s161 = sphi 0, %s161
      %s163 = sphi 0, %s161
      %s164 = sphi 0, %s163
      %s178 = sphi 0, %s164
      %s184 = sphi 0, %s186
      %s187 = sphi 0, %s184
      %s188 = sphi 0, %s187
      %s204 = sphi 0, %s188
      %s212 = sphi 0, %s214
      %s215 = sphi 0, %s212
      %s216 = sphi 0, %s215
      %s232 = sphi 0, %s216
    $region4: #{conv_block_forward.3} parent=1 // loop_header_branch
      %19 = sbr.rel (%p17) target = $region8
    $region5: #{conv_block_forward.3} parent=1 // loop_body
      %s21 = ssub.s32 %s16, 1
      %s22 = ssub.s32 %s16, 2
      %s29 = sadd.s32 1, %s24
      %p30 = scmp.ge.s32.totalorder %s29, 1
      %s31 = scalar_select %p30, 0, %s29
      %s32 = sadd.s32 1, %s23
      %s33 = scalar_select %p30, %s32, %s23
      %p34 = scmp.ge.s32.totalorder %s33, 2
      %s35 = scalar_select %p34, 0, %s33
      %s36 = ssub.s32 %s23, %s35
      %p37 = scmp.eq.s32.totalorder %s36, 0
      %s39 = sadd.s32 %s38, 1
      %s40 = scalar_select %p37, %s38, %s39
      %p43 = pneg %p37
      %p44 = scmp.eq.s32.totalorder %s16, 1
      %p45 = por %p43, %p44
      %p46 = scmp.ne.s32.totalorder %s38, %s41
      %p47 = scmp.eq.s32.totalorder %s16, 0
      %p48 = por %p46, %p47
      %p49 = scmp.ne.s32.totalorder %s38, %s41
      %p50 = scmp.eq.s32.totalorder %s21, 1
      %p51 = por %p49, %p50
      %p52 = scmp.ne.s32.totalorder %s41, %s42
      %p53 = scmp.eq.s32.totalorder %s21, 0
      %p54 = por %p52, %p53
      %p55 = scmp.ne.s32.totalorder %s41, %s42
      %p56 = scmp.eq.s32.totalorder %s22, 1
      %p57 = por %p55, %p56
      %p59 = scmp.ne.s32.totalorder %s42, %s58
      %p60 = scmp.eq.s32.totalorder %s22, 0
      %p61 = por %p59, %p60
      %s62 = ssub.s32 %s23, %s35
      %p63 = scmp.eq.s32.totalorder %s62, 0
      %s65 = sadd.s32 %s64, 1
      %s66 = scalar_select %p63, %s64, %s65
      %p69 = pneg %p63
      %p70 = scmp.eq.s32.totalorder %s16, 1
      %p71 = por %p69, %p70
      %p72 = scmp.ne.s32.totalorder %s64, %s67
      %p73 = scmp.eq.s32.totalorder %s16, 0
      %p74 = por %p72, %p73
      %p75 = scmp.ne.s32.totalorder %s64, %s67
      %p76 = scmp.eq.s32.totalorder %s21, 1
      %p77 = por %p75, %p76
      %p78 = scmp.ne.s32.totalorder %s67, %s68
      %p79 = scmp.eq.s32.totalorder %s21, 0
      %p80 = por %p78, %p79
      %p81 = scmp.ne.s32.totalorder %s67, %s68
      %p82 = scmp.eq.s32.totalorder %s22, 1
      %p83 = por %p81, %p82
      %p85 = scmp.ne.s32.totalorder %s68, %s84
      %p86 = scmp.eq.s32.totalorder %s22, 0
      %p87 = por %p85, %p86
      %s89 = sadd.s32 %s88, 1
      %p92 = scmp.eq.s32.totalorder %s16, 1
      %p93 = scmp.ne.s32.totalorder %s88, %s90
      %p94 = scmp.eq.s32.totalorder %s16, 0
      %p95 = por %p93, %p94
      %p96 = scmp.ne.s32.totalorder %s88, %s90
      %p97 = scmp.eq.s32.totalorder %s21, 1
      %p98 = por %p96, %p97
      %p99 = scmp.ne.s32.totalorder %s90, %s91
      %p100 = scmp.eq.s32.totalorder %s21, 0
      %p101 = por %p99, %p100
      %p102 = scmp.ne.s32.totalorder %s90, %s91
      %p103 = scmp.eq.s32.totalorder %s22, 1
      %p104 = por %p102, %p103
      %p106 = scmp.ne.s32.totalorder %s91, %s105
      %p107 = scmp.eq.s32.totalorder %s22, 0
      %p108 = por %p106, %p107
      %s109 = ssub.s32 %s24, %s31
      %p110 = scmp.eq.s32.totalorder %s109, 0
      %s112 = sadd.s32 %s111, 1
      %s113 = scalar_select %p110, %s111, %s112
      %p116 = pneg %p110
      %p117 = scmp.eq.s32.totalorder %s16, 1
      %p118 = por %p116, %p117
      %p119 = scmp.ne.s32.totalorder %s111, %s114
      %p120 = scmp.eq.s32.totalorder %s16, 0
      %p121 = por %p119, %p120
      %p122 = scmp.ne.s32.totalorder %s111, %s114
      %p123 = scmp.eq.s32.totalorder %s21, 1
      %p124 = por %p122, %p123
      %p125 = scmp.ne.s32.totalorder %s114, %s115
      %p126 = scmp.eq.s32.totalorder %s21, 0
      %p127 = por %p125, %p126
      %p128 = scmp.ne.s32.totalorder %s114, %s115
      %p129 = scmp.eq.s32.totalorder %s22, 1
      %p130 = por %p128, %p129
      %p132 = scmp.ne.s32.totalorder %s115, %s131
      %p133 = scmp.eq.s32.totalorder %s22, 0
      %p134 = por %p132, %p133
      %s135 = ssub.s32 %s24, %s31
      %p136 = scmp.eq.s32.totalorder %s135, 0
      %s138 = sadd.s32 %s137, 1
      %s139 = scalar_select %p136, %s137, %s138
      %p142 = pneg %p136
      %p143 = scmp.eq.s32.totalorder %s16, 1
      %p144 = por %p142, %p143
      %p145 = scmp.ne.s32.totalorder %s137, %s140
      %p146 = scmp.eq.s32.totalorder %s16, 0
      %p147 = por %p145, %p146
      %p148 = scmp.ne.s32.totalorder %s137, %s140
      %p149 = scmp.eq.s32.totalorder %s21, 1
      %p150 = por %p148, %p149
      %p151 = scmp.ne.s32.totalorder %s140, %s141
      %p152 = scmp.eq.s32.totalorder %s21, 0
      %p153 = por %p151, %p152
      %p154 = scmp.ne.s32.totalorder %s140, %s141
      %p155 = scmp.eq.s32.totalorder %s22, 1
      %p156 = por %p154, %p155
      %p158 = scmp.ne.s32.totalorder %s141, %s157
      %p159 = scmp.eq.s32.totalorder %s22, 0
      %p160 = por %p158, %p159
      %s162 = sadd.s32 %s161, 1
      %p165 = scmp.eq.s32.totalorder %s16, 1
      %p166 = scmp.ne.s32.totalorder %s161, %s163
      %p167 = scmp.eq.s32.totalorder %s16, 0
      %p168 = por %p166, %p167
      %p169 = scmp.ne.s32.totalorder %s161, %s163
      %p170 = scmp.eq.s32.totalorder %s21, 1
      %p171 = por %p169, %p170
      %p172 = scmp.ne.s32.totalorder %s163, %s164
      %p173 = scmp.eq.s32.totalorder %s21, 0
      %p174 = por %p172, %p173
      %p175 = scmp.ne.s32.totalorder %s163, %s164
      %p176 = scmp.eq.s32.totalorder %s22, 1
      %p177 = por %p175, %p176
      %p179 = scmp.ne.s32.totalorder %s164, %s178
      %p180 = scmp.eq.s32.totalorder %s22, 0
      %p181 = por %p179, %p180
      %s182 = ssub.s32 %s24, %s31
      %p183 = scmp.eq.s32.totalorder %s182, 0
      %s185 = sadd.s32 %s184, 1
      %s186 = scalar_select %p183, %s184, %s185
      %p189 = pneg %p183
      %p190 = scmp.eq.s32.totalorder %s16, 1
      %p191 = por %p189, %p190
      %p192 = scmp.ne.s32.totalorder %s184, %s187
      %p193 = scmp.eq.s32.totalorder %s16, 0
      %p194 = por %p192, %p193
      %p195 = scmp.ne.s32.totalorder %s184, %s187
      %p196 = scmp.eq.s32.totalorder %s21, 1
      %p197 = por %p195, %p196
      %p198 = scmp.ne.s32.totalorder %s187, %s188
      %p199 = scmp.eq.s32.totalorder %s21, 0
      %p200 = por %p198, %p199
      %p201 = scmp.ne.s32.totalorder %s187, %s188
      %p202 = scmp.eq.s32.totalorder %s22, 1
      %p203 = por %p201, %p202
      %p205 = scmp.ne.s32.totalorder %s188, %s204
      %p206 = scmp.eq.s32.totalorder %s22, 0
      %p207 = por %p205, %p206
      %s208 = ssub.s32 %s23, %s35
      %s209 = ssub.s32 %s24, %s31
      %s210 = sor.u32 %s208, %s209
      %p211 = scmp.eq.s32.totalorder %s210, 0
      %s213 = sadd.s32 %s212, 1
      %s214 = scalar_select %p211, %s212, %s213
      %p217 = pneg %p211
      %p218 = scmp.eq.s32.totalorder %s16, 1
      %p219 = por %p217, %p218
      %p220 = scmp.ne.s32.totalorder %s212, %s215
      %p221 = scmp.eq.s32.totalorder %s16, 0
      %p222 = por %p220, %p221
      %p223 = scmp.ne.s32.totalorder %s212, %s215
      %p224 = scmp.eq.s32.totalorder %s21, 1
      %p225 = por %p223, %p224
      %p226 = scmp.ne.s32.totalorder %s215, %s216
      %p227 = scmp.eq.s32.totalorder %s21, 0
      %p228 = por %p226, %p227
      %p229 = scmp.ne.s32.totalorder %s215, %s216
      %p230 = scmp.eq.s32.totalorder %s22, 1
      %p231 = por %p229, %p230
      %p233 = scmp.ne.s32.totalorder %s216, %s232
      %p234 = scmp.eq.s32.totalorder %s22, 0
      %p235 = por %p233, %p234
      %p236 = scmp.le.s32.totalorder 1, %s16
      %p237 = scmp.lt.s32.totalorder %s16, 3
      %p238 = pnand %p236, %p237
      %p239 = pneg %p238
      // Predicated region
      $region9: #{conv_block_forward.3} parent=5 // pred_check
        _
      $region10: #{conv_block_forward.3} parent=5 // pred_check_branch
        %241 = sbr.rel (%p238) target = $region12
      $region11: #{conv_block_forward.3} parent=5 // pred_region
        %s242 = ssub.s32 %s16, 1
        // Predicated region
        $region13: #{conv_block_forward.3} parent=11 // pred_check
          %p243 = pneg %p101
        $region14: #{conv_block_forward.3} parent=11 // pred_check_branch
          %245 = sbr.rel (%p243) target = $region16
        $region15: #{conv_block_forward.3} parent=11 // pred_region
          _
        $region16: #{conv_block_forward.3} parent=11 // pred_fallthru
          _
        // Predicated region
        $region17: #{conv_block_forward.3} parent=11 // pred_check
          %p246 = pneg %p127
        $region18: #{conv_block_forward.3} parent=11 // pred_check_branch
          %248 = sbr.rel (%p246) target = $region20
        $region19: #{conv_block_forward.3} parent=11 // pred_region
          %p249 = scmp.lt.s32.totalorder %s26, 0
          %s250 = scalar_select %p249, %s26, 0
          %s251 = smul.addr %s250, 4
          %s252 = scalar_lea.vmem %s3, %s251
        $region20: #{conv_block_forward.3} parent=11 // pred_fallthru
          _
        // Predicated region
        $region21: #{conv_block_forward.3} parent=11 // pred_check
          %p253 = pneg %p153
        $region22: #{conv_block_forward.3} parent=11 // pred_check_branch
          %255 = sbr.rel (%p253) target = $region24
        $region23: #{conv_block_forward.3} parent=11 // pred_region
          %p256 = scmp.lt.s32.totalorder %s26, 0
          %s257 = scalar_select %p256, %s26, 0
          %s258 = smul.addr %s257, 2
          %s259 = scalar_lea.vmem %s4, %s258
        $region24: #{conv_block_forward.3} parent=11 // pred_fallthru
          _
        // Predicated region
        $region25: #{conv_block_forward.3} parent=11 // pred_check
          %p260 = pneg %p174
        $region26: #{conv_block_forward.3} parent=11 // pred_check_branch
          %262 = sbr.rel (%p260) target = $region28
        $region27: #{conv_block_forward.3} parent=11 // pred_region
          _
        $region28: #{conv_block_forward.3} parent=11 // pred_fallthru
          _
        // Predicated region
        $region29: #{conv_block_forward.3} parent=11 // pred_check
          %p263 = pneg %p200
        $region30: #{conv_block_forward.3} parent=11 // pred_check_branch
          %265 = sbr.rel (%p263) target = $region32
        $region31: #{conv_block_forward.3} parent=11 // pred_region
          %p266 = scmp.lt.s32.totalorder %s26, 0
          %s267 = scalar_select %p266, %s26, 0
          %s268 = scalar_lea.vmem %s6, %s267
        $region32: #{conv_block_forward.3} parent=11 // pred_fallthru
          _
      $region12: #{conv_block_forward.3} parent=5 // pred_fallthru
        _
      %p269 = scmp.lt.s32.totalorder %s16, 2
      // Predicated region
      $region33: #{conv_block_forward.3} parent=5 // pred_check
        %p270 = pneg %p269
      $region34: #{conv_block_forward.3} parent=5 // pred_check_branch
        %272 = sbr.rel (%p270) target = $region36
      $region35: #{conv_block_forward.3} parent=5 // pred_region
        // Predicated region
        $region37: #{conv_block_forward.3} parent=35 // pred_check
          %p273 = pneg %p48
        $region38: #{conv_block_forward.3} parent=35 // pred_check_branch
          %275 = sbr.rel (%p273) target = $region40
        $region39: #{conv_block_forward.3} parent=35 // pred_region
          %p276 = scmp.lt.s32.totalorder %s23, 1
          %s277 = scalar_select %p276, %s23, 1
          %s278 = smul.addr %s277, 16
          %s279 = smul.addr %s278, 4
          %s280 = scalar_lea.vmem %s0, %s279
        $region40: #{conv_block_forward.3} parent=35 // pred_fallthru
          _
        // Predicated region
        $region41: #{conv_block_forward.3} parent=35 // pred_check
          %p281 = pneg %p74
        $region42: #{conv_block_forward.3} parent=35 // pred_check_branch
          %283 = sbr.rel (%p281) target = $region44
        $region43: #{conv_block_forward.3} parent=35 // pred_region
          %p284 = scmp.lt.s32.totalorder %s23, 1
          %s285 = scalar_select %p284, %s23, 1
          %s286 = smul.addr %s285, 8
          %s287 = smul.addr %s286, 4
          %s288 = scalar_lea.vmem %s1, %s287
        $region44: #{conv_block_forward.3} parent=35 // pred_fallthru
          _
      $region36: #{conv_block_forward.3} parent=5 // pred_fallthru
        _
      %p289 = scmp.le.s32.totalorder 1, %s16
      %p290 = scmp.lt.s32.totalorder %s16, 3
      %p291 = pnand %p289, %p290
      %p292 = pneg %p291
      // Predicated region
      $region45: #{conv_block_forward.3} parent=5 // pred_check
        _
      $region46: #{conv_block_forward.3} parent=5 // pred_check_branch
        %294 = sbr.rel (%p291) target = $region48
      $region47: #{conv_block_forward.3} parent=5 // pred_region
        %s295 = ssub.s32 %s16, 1
        %p296 = scmp.lt.s32.totalorder %s25, 1
        %s297 = scalar_select %p296, %s25, 1
        %s298 = smul.addr %s297, 16
        %s299 = smul.addr %s298, 4
        %s300 = scalar_lea.vmem %s0, %s299
        %p301 = pneg %p54
        %p302 = pneg %p51
        %p303 = scmp.lt.s32.totalorder %s25, 1
        %s304 = scalar_select %p303, %s25, 1
        %s305 = smul.addr %s304, 8
        %s306 = smul.addr %s305, 4
        %s307 = scalar_lea.vmem %s1, %s306
        %p308 = pneg %p80
        %p309 = pneg %p77
        %p310 = pneg %p101
        %p311 = pneg %p98
        %p312 = scmp.lt.s32.totalorder %s26, 0
        %s313 = scalar_select %p312, %s26, 0
        %s314 = smul.addr %s313, 4
        %s315 = scalar_lea.vmem %s3, %s314
        %p316 = pneg %p127
        %p317 = pneg %p124
        %p318 = scmp.lt.s32.totalorder %s26, 0
        %s319 = scalar_select %p318, %s26, 0
        %s320 = smul.addr %s319, 2
        %s321 = scalar_lea.vmem %s4, %s320
        %p322 = pneg %p153
        %p323 = pneg %p150
        %p324 = pneg %p174
        %p325 = pneg %p171
        %p326 = scmp.lt.s32.totalorder %s26, 0
        %s327 = scalar_select %p326, %s26, 0
        %s328 = scalar_lea.vmem %s6, %s327
        %p329 = pneg %p200
        %p330 = pneg %p197
        %p331 = pneg %p228
        %p332 = pneg %p225
        %s333 = sand.u32 %s215, 1
        %s334 = scalar_lea.sflag [#allocation5], %s333
        %s335 = sand.u32 %s215, 1
        %s336 = smul.addr %s335, 64
        %s337 = scalar_lea.vmem [#allocation4], %s336
        %p338 = scmp.lt.s32.totalorder %s25, 1
        %s339 = scalar_select %p338, %s25, 1
        %s340 = smul.addr %s339, 16
        %s341 = smul.addr %s340, 4
        %s342 = scalar_lea.vmem %s0, %s341
        %p343 = scmp.lt.s32.totalorder %s25, 1
        %s344 = scalar_select %p343, %s25, 1
        %s345 = smul.addr %s344, 8
        %s346 = smul.addr %s345, 4
        %s347 = scalar_lea.vmem %s1, %s346
        %p348 = scmp.lt.s32.totalorder %s26, 0
        %s349 = scalar_select %p348, %s26, 0
        %s350 = smul.addr %s349, 4
        %s351 = scalar_lea.vmem %s3, %s350
        %p352 = scmp.lt.s32.totalorder %s26, 0
        %s353 = scalar_select %p352, %s26, 0
        %s354 = smul.addr %s353, 2
        %s355 = scalar_lea.vmem %s4, %s354
        %p356 = scmp.lt.s32.totalorder %s26, 0
        %s357 = scalar_select %p356, %s26, 0
        %s358 = scalar_lea.vmem %s6, %s357
        %p360 = scmp.eq.s32.totalorder %s26, 0
        // Predicated region
        $region49: #{conv_block_forward.3} parent=47 // pred_check
          %p361 = pneg %p360
        $region50: #{conv_block_forward.3} parent=47 // pred_check_branch
          %363 = sbr.rel (%p361) target = $region52
        $region51: #{conv_block_forward.3} parent=47 // pred_region
          %vm364 = vcmask 64512
          %365 = vst.msk [vmem:[#allocation2] sm:$0xff] %vm364, 0.0
          %366 = vst.msk [vmem:[#allocation2 + $0x8] sm:$0xff] %vm364, 0.0
          %367 = vst.msk [vmem:[#allocation2 + $0x10] sm:$0xff] %vm364, 0.0
          %368 = vst.msk [vmem:[#allocation2 + $0x18] sm:$0xff] %vm364, 0.0
          %369 = vst.msk [vmem:[#allocation2 + $0x20] sm:$0xff] %vm364, 0.0
          %370 = vst.msk [vmem:[#allocation2 + $0x28] sm:$0xff] %vm364, 0.0
          %371 = vst.msk [vmem:[#allocation2 + $0x30] sm:$0xff] %vm364, 0.0
          %372 = vst.msk [vmem:[#allocation2 + $0x38] sm:$0xff] %vm364, 0.0
          %v373 = vld [vmem:[%s342] sm:$0xf]
          %v374 = vld [vmem:[%s342 + $0x8] sm:$0xf]
          %v375 = vld [vmem:[%s342 + $0x10] sm:$0xf]
          %v376 = vld [vmem:[%s342 + $0x18] sm:$0xf]
          %v377 = vld [vmem:[%s342 + $0x20] sm:$0xf]
          %v378 = vld [vmem:[%s342 + $0x28] sm:$0xf]
          %v379 = vld [vmem:[%s342 + $0x30] sm:$0xf]
          %v380 = vld [vmem:[%s342 + $0x38] sm:$0xf]
          %v381 = vld [vmem:[%s2] sm:$0xf]
          %v389 = vunpack.c.l.b16 %v373
          %v390 = vunpack.c.l.b16 %v374
          %v391 = vunpack.c.l.b16 %v375
          %v392 = vunpack.c.l.b16 %v376
          %v393 = vunpack.c.l.b16 %v377
          %v394 = vunpack.c.l.b16 %v378
          %v395 = vunpack.c.l.b16 %v379
          %v396 = vpack.c.b16 %v390, %v389
          %v397 = vpack.c.b16 %v392, %v391
          %v398 = vpack.c.b16 %v394, %v393
          %v399 = vpack.c.b16 %v395, %v395
          %v401 = vsel %vm364, %v396, 0
          %v404 = vsel %vm364, %v397, 0
          %v407 = vsel %vm364, %v398, 0
          %v410 = vsel %vm364, %v399, 0
          %vm412 = vcmask 1043456
          %v414 = vsel %vm412, %v381, 0
          %416 = vmatpush.bf16.msra.mxu0 0
          %417 = vmatpush.bf16.msra.mxu0 0
          %418 = vmatpush.bf16.msra.mxu0 0
          %419 = vmatpush.bf16.msra.mxu0 0
          %420 = vmatpush.bf16.msra.mxu0 0
          %421 = vmatpush.bf16.msra.mxu0 0
          %422 = vmatpush.bf16.msra.mxu0 0
          %423 = vmatpush.bf16.msra.mxu0 %v414
          %424 = vmatmul.bf16.gmra.mxu0 %v401
          %v425 = vpop.f32.mrf.mxu0
          %v426 = vadd.f32 0.0, %v425
          %v427 = vpop.f32.mrf.mxu0
          %v428 = vadd.f32 0.0, %v427
          %429 = vmatmul.bf16.gmra.mxu0 %v404
          %v430 = vpop.f32.mrf.mxu0
          %v431 = vadd.f32 0.0, %v430
          %v432 = vpop.f32.mrf.mxu0
          %v433 = vadd.f32 0.0, %v432
          %434 = vmatmul.bf16.gmra.mxu0 %v407
          %v435 = vpop.f32.mrf.mxu0
          %v436 = vadd.f32 0.0, %v435
          %v437 = vpop.f32.mrf.mxu0
          %v438 = vadd.f32 0.0, %v437
          %439 = vmatmul.bf16.gmra.mxu0 %v410
          %v440 = vpop.f32.mrf.mxu0
          %v441 = vadd.f32 0.0, %v440
          %v442 = vpop.f32.mrf.mxu0
          %443 = vdwg.mxu0
          %s444 = scalar_lea.vmem [#allocation2], 8
          %v445 = vld [vmem:[%s444] sm:$0xff]
          %v446 = vld [vmem:[%s444 + $0x8] sm:$0xff]
          %v447 = vld [vmem:[%s444 + $0x10] sm:$0xff]
          %v448 = vld [vmem:[%s444 + $0x18] sm:$0xff]
          %v449 = vld [vmem:[%s444 + $0x20] sm:$0xff]
          %v450 = vld [vmem:[%s444 + $0x28] sm:$0xff]
          %v451 = vld [vmem:[%s444 + $0x30] sm:$0xff]
          %v452 = vadd.f32 %v445, %v426
          %v453 = vadd.f32 %v446, %v428
          %v454 = vadd.f32 %v447, %v431
          %v455 = vadd.f32 %v448, %v433
          %v456 = vadd.f32 %v449, %v436
          %v457 = vadd.f32 %v450, %v438
          %v458 = vadd.f32 %v451, %v441
          %459 = vst.msk [vmem:[%s444] sm:$0xff] %vm364, %v452
          %460 = vst.msk [vmem:[%s444 + $0x8] sm:$0xff] %vm364, %v453
          %461 = vst.msk [vmem:[%s444 + $0x10] sm:$0xff] %vm364, %v454
          %462 = vst.msk [vmem:[%s444 + $0x18] sm:$0xff] %vm364, %v455
          %463 = vst.msk [vmem:[%s444 + $0x20] sm:$0xff] %vm364, %v456
          %464 = vst.msk [vmem:[%s444 + $0x28] sm:$0xff] %vm364, %v457
          %465 = vst.msk [vmem:[%s444 + $0x30] sm:$0xff] %vm364, %v458
          %s466 = scalar_lea.vmem %s2, 12
          %v467 = vld [vmem:[%s466] sm:$0xf]
          %v469 = vunpack.c.l.b16 %v380
          %v470 = vpack.c.b16 %v469, %v395
          %v472 = vsel %vm364, %v470, 0
          %v475 = vsel %vm412, %v467, 0
          %477 = vmatpush.bf16.msra.mxu0 0
          %478 = vmatpush.bf16.msra.mxu0 0
          %479 = vmatpush.bf16.msra.mxu0 0
          %480 = vmatpush.bf16.msra.mxu0 0
          %481 = vmatpush.bf16.msra.mxu0 0
          %482 = vmatpush.bf16.msra.mxu0 0
          %483 = vmatpush.bf16.msra.mxu0 0
          %484 = vmatpush.bf16.msra.mxu0 %v475
          %485 = vmatmul.bf16.gmra.mxu0 %v401
          %v486 = vpop.f32.mrf.mxu0
          %v487 = vadd.f32 0.0, %v486
          %v488 = vpop.f32.mrf.mxu0
          %v489 = vadd.f32 0.0, %v488
          %490 = vmatmul.bf16.gmra.mxu0 %v404
          %v491 = vpop.f32.mrf.mxu0
          %v492 = vadd.f32 0.0, %v491
          %v493 = vpop.f32.mrf.mxu0
          %v494 = vadd.f32 0.0, %v493
          %495 = vmatmul.bf16.gmra.mxu0 %v407
          %v496 = vpop.f32.mrf.mxu0
          %v497 = vadd.f32 0.0, %v496
          %v498 = vpop.f32.mrf.mxu0
          %v499 = vadd.f32 0.0, %v498
          %500 = vmatmul.bf16.gmra.mxu0 %v472
          %v501 = vpop.f32.mrf.mxu0
          %v502 = vadd.f32 0.0, %v501
          %v503 = vpop.f32.mrf.mxu0
          %v504 = vadd.f32 0.0, %v503
          %505 = vdwg.mxu0
          %v506 = vld [vmem:[#allocation2] sm:$0xff]
          %v507 = vld [vmem:[#allocation2 + $0x8] sm:$0xff]
          %v508 = vld [vmem:[#allocation2 + $0x10] sm:$0xff]
          %v509 = vld [vmem:[#allocation2 + $0x18] sm:$0xff]
          %v510 = vld [vmem:[#allocation2 + $0x20] sm:$0xff]
          %v511 = vld [vmem:[#allocation2 + $0x28] sm:$0xff]
          %v512 = vld [vmem:[#allocation2 + $0x30] sm:$0xff]
          %v513 = vld [vmem:[#allocation2 + $0x38] sm:$0xff]
          %v514 = vadd.f32 %v506, %v487
          %v515 = vadd.f32 %v507, %v489
          %v516 = vadd.f32 %v508, %v492
          %v517 = vadd.f32 %v509, %v494
          %v518 = vadd.f32 %v510, %v497
          %v519 = vadd.f32 %v511, %v499
          %v520 = vadd.f32 %v512, %v502
          %v521 = vadd.f32 %v513, %v504
          %522 = vst.msk [vmem:[#allocation2] sm:$0xff] %vm364, %v514
          %523 = vst.msk [vmem:[#allocation2 + $0x8] sm:$0xff] %vm364, %v515
          %524 = vst.msk [vmem:[#allocation2 + $0x10] sm:$0xff] %vm364, %v516
          %525 = vst.msk [vmem:[#allocation2 + $0x18] sm:$0xff] %vm364, %v517
          %526 = vst.msk [vmem:[#allocation2 + $0x20] sm:$0xff] %vm364, %v518
          %527 = vst.msk [vmem:[#allocation2 + $0x28] sm:$0xff] %vm364, %v519
          %528 = vst.msk [vmem:[#allocation2 + $0x30] sm:$0xff] %vm364, %v520
          %529 = vst.msk [vmem:[#allocation2 + $0x38] sm:$0xff] %vm364, %v521
          %s530 = scalar_lea.vmem %s2, 24
          %v531 = vld [vmem:[%s530] sm:$0xf]
          %v532 = vpack.c.b16 %v391, %v390
          %v533 = vpack.c.b16 %v393, %v392
          %v534 = vpack.c.b16 %v395, %v394
          %v535 = vpack.c.b16 %v469, %v469
          %v537 = vsel %vm364, %v532, 0
          %v540 = vsel %vm364, %v533, 0
          %v543 = vsel %vm364, %v534, 0
          %v546 = vsel %vm364, %v535, 0
          %v549 = vsel %vm412, %v531, 0
          %551 = vmatpush.bf16.msra.mxu0 0
          %552 = vmatpush.bf16.msra.mxu0 0
          %553 = vmatpush.bf16.msra.mxu0 0
          %554 = vmatpush.bf16.msra.mxu0 0
          %555 = vmatpush.bf16.msra.mxu0 0
          %556 = vmatpush.bf16.msra.mxu0 0
          %557 = vmatpush.bf16.msra.mxu0 0
          %558 = vmatpush.bf16.msra.mxu0 %v549
          %559 = vmatmul.bf16.gmra.mxu0 %v537
          %v560 = vpop.f32.mrf.mxu0
          %v561 = vadd.f32 0.0, %v560
          %v562 = vpop.f32.mrf.mxu0
          %v563 = vadd.f32 0.0, %v562
          %564 = vmatmul.bf16.gmra.mxu0 %v540
          %v565 = vpop.f32.mrf.mxu0
          %v566 = vadd.f32 0.0, %v565
          %v567 = vpop.f32.mrf.mxu0
          %v568 = vadd.f32 0.0, %v567
          %569 = vmatmul.bf16.gmra.mxu0 %v543
          %v570 = vpop.f32.mrf.mxu0
          %v571 = vadd.f32 0.0, %v570
          %v572 = vpop.f32.mrf.mxu0
          %v573 = vadd.f32 0.0, %v572
          %574 = vmatmul.bf16.gmra.mxu0 %v546
          %v575 = vpop.f32.mrf.mxu0
          %v576 = vadd.f32 0.0, %v575
          %v577 = vpop.f32.mrf.mxu0
          %578 = vdwg.mxu0
          %v579 = vld [vmem:[#allocation2] sm:$0xff]
          %v580 = vld [vmem:[#allocation2 + $0x8] sm:$0xff]
          %v581 = vld [vmem:[#allocation2 + $0x10] sm:$0xff]
          %v582 = vld [vmem:[#allocation2 + $0x18] sm:$0xff]
          %v583 = vld [vmem:[#allocation2 + $0x20] sm:$0xff]
          %v584 = vld [vmem:[#allocation2 + $0x28] sm:$0xff]
          %v585 = vld [vmem:[#allocation2 + $0x30] sm:$0xff]
          %v586 = vadd.f32 %v579, %v561
          %v587 = vadd.f32 %v580, %v563
          %v588 = vadd.f32 %v581, %v566
          %v589 = vadd.f32 %v582, %v568
          %v590 = vadd.f32 %v583, %v571
          %v591 = vadd.f32 %v584, %v573
          %v592 = vadd.f32 %v585, %v576
          %593 = vst.msk [vmem:[#allocation2] sm:$0xff] %vm364, %v586
          %594 = vst.msk [vmem:[#allocation2 + $0x8] sm:$0xff] %vm364, %v587
          %595 = vst.msk [vmem:[#allocation2 + $0x10] sm:$0xff] %vm364, %v588
          %596 = vst.msk [vmem:[#allocation2 + $0x18] sm:$0xff] %vm364, %v589
          %597 = vst.msk [vmem:[#allocation2 + $0x20] sm:$0xff] %vm364, %v590
          %598 = vst.msk [vmem:[#allocation2 + $0x28] sm:$0xff] %vm364, %v591
          %599 = vst.msk [vmem:[#allocation2 + $0x30] sm:$0xff] %vm364, %v592
          %v600 = vld [vmem:[%s342] sm:$0xf]
          %v601 = vld [vmem:[%s342 + $0x4] sm:$0x1]
          %v602 = vld [vmem:[%s342 + $0x8] sm:$0xf]
          %v603 = vld [vmem:[%s342 + $0xc] sm:$0x1]
          %v604 = vld [vmem:[%s342 + $0x10] sm:$0xf]
          %v605 = vld [vmem:[%s342 + $0x14] sm:$0x1]
          %v606 = vld [vmem:[%s342 + $0x18] sm:$0xf]
          %v607 = vld [vmem:[%s342 + $0x1c] sm:$0x1]
          %v608 = vld [vmem:[%s342 + $0x20] sm:$0xf]
          %v609 = vld [vmem:[%s342 + $0x24] sm:$0x1]
          %v610 = vld [vmem:[%s342 + $0x28] sm:$0xf]
          %v611 = vld [vmem:[%s342 + $0x2c] sm:$0x1]
          %v612 = vld [vmem:[%s342 + $0x30] sm:$0xf]
          %v613 = vld [vmem:[%s342 + $0x34] sm:$0x1]
          %v614 = vld [vmem:[%s342 + $0x38] sm:$0xf]
          %v615 = vld [vmem:[%s342 + $0x3c] sm:$0x1]
          %vm616 = vsmask.f32 3328
          %vm617 = vsmask.f32 7440
          %vm618 = vmor %vm616, %vm617
          %v620 = vshrl.u32 %v600, 16
          %v622 = vrot.slane %v620, 4
          %v623 = vshll.u32 %v600, 16
          %v625 = vrot.slane %v623, 5
          %v626 = vor.u32 %v622, %v625
          %v627 = vrot.slane %v626, 4
          %v629 = vshll.u32 %v601, 16
          %v631 = vrot.slane %v629, 5
          %v632 = vsel %vm618, %v627, %v631
          %v634 = vshrl.u32 %v602, 16
          %v636 = vrot.slane %v634, 4
          %v637 = vshll.u32 %v602, 16
          %v639 = vrot.slane %v637, 5
          %v640 = vor.u32 %v636, %v639
          %v641 = vrot.slane %v640, 4
          %v643 = vshll.u32 %v603, 16
          %v645 = vrot.slane %v643, 5
          %v646 = vsel %vm618, %v641, %v645
          %v648 = vshrl.u32 %v604, 16
          %v650 = vrot.slane %v648, 4
          %v651 = vshll.u32 %v604, 16
          %v653 = vrot.slane %v651, 5
          %v654 = vor.u32 %v650, %v653
          %v655 = vrot.slane %v654, 4
          %v657 = vshll.u32 %v605, 16
          %v659 = vrot.slane %v657, 5
          %v660 = vsel %vm618, %v655, %v659
          %v662 = vshrl.u32 %v606, 16
          %v664 = vrot.slane %v662, 4
          %v665 = vshll.u32 %v606, 16
          %v667 = vrot.slane %v665, 5
          %v668 = vor.u32 %v664, %v667
          %v669 = vrot.slane %v668, 4
          %v671 = vshll.u32 %v607, 16
          %v673 = vrot.slane %v671, 5
          %v674 = vsel %vm618, %v669, %v673
          %v676 = vshrl.u32 %v608, 16
          %v678 = vrot.slane %v676, 4
          %v679 = vshll.u32 %v608, 16
          %v681 = vrot.slane %v679, 5
          %v682 = vor.u32 %v678, %v681
          %v683 = vrot.slane %v682, 4
          %v685 = vshll.u32 %v609, 16
          %v687 = vrot.slane %v685, 5
          %v688 = vsel %vm618, %v683, %v687
          %v690 = vshrl.u32 %v610, 16
          %v692 = vrot.slane %v690, 4
          %v693 = vshll.u32 %v610, 16
          %v695 = vrot.slane %v693, 5
          %v696 = vor.u32 %v692, %v695
          %v697 = vrot.slane %v696, 4
          %v699 = vshll.u32 %v611, 16
          %v701 = vrot.slane %v699, 5
          %v702 = vsel %vm618, %v697, %v701
          %v704 = vshrl.u32 %v612, 16
          %v706 = vrot.slane %v704, 4
          %v707 = vshll.u32 %v612, 16
          %v709 = vrot.slane %v707, 5
          %v710 = vor.u32 %v706, %v709
          %v711 = vrot.slane %v710, 4
          %v713 = vshll.u32 %v613, 16
          %v715 = vrot.slane %v713, 5
          %v716 = vsel %vm618, %v711, %v715
          %s717 = scalar_lea.vmem %s2, 4
          %v718 = vld [vmem:[%s717] sm:$0xf]
          %v719 = vunpack.c.l.b16 %v632
          %v720 = vunpack.c.l.b16 %v646
          %v721 = vunpack.c.l.b16 %v660
          %v722 = vunpack.c.l.b16 %v674
          %v723 = vunpack.c.l.b16 %v688
          %v724 = vunpack.c.l.b16 %v702
          %v725 = vunpack.c.l.b16 %v716
          %v726 = vpack.c.b16 %v720, %v719
          %v727 = vpack.c.b16 %v722, %v721
          %v728 = vpack.c.b16 %v724, %v723
          %v729 = vpack.c.b16 %v725, %v725
          %v731 = vsel %vm364, %v726, 0
          %v734 = vsel %vm364, %v727, 0
          %v737 = vsel %vm364, %v728, 0
          %v740 = vsel %vm364, %v729, 0
          %v743 = vsel %vm412, %v718, 0
          %745 = vmatpush.bf16.msra.mxu0 0
          %746 = vmatpush.bf16.msra.mxu0 0
          %747 = vmatpush.bf16.msra.mxu0 0
          %748 = vmatpush.bf16.msra.mxu0 0
          %749 = vmatpush.bf16.msra.mxu0 0
          %750 = vmatpush.bf16.msra.mxu0 0
          %751 = vmatpush.bf16.msra.mxu0 0
          %752 = vmatpush.bf16.msra.mxu0 %v743
          %753 = vmatmul.bf16.gmra.mxu0 %v731
          %v754 = vpop.f32.mrf.mxu0
          %v755 = vadd.f32 0.0, %v754
          %v756 = vpop.f32.mrf.mxu0
          %v757 = vadd.f32 0.0, %v756
          %758 = vmatmul.bf16.gmra.mxu0 %v734
          %v759 = vpop.f32.mrf.mxu0
          %v760 = vadd.f32 0.0, %v759
          %v761 = vpop.f32.mrf.mxu0
          %v762 = vadd.f32 0.0, %v761
          %763 = vmatmul.bf16.gmra.mxu0 %v737
          %v764 = vpop.f32.mrf.mxu0
          %v765 = vadd.f32 0.0, %v764
          %v766 = vpop.f32.mrf.mxu0
          %v767 = vadd.f32 0.0, %v766
          %768 = vmatmul.bf16.gmra.mxu0 %v740
          %v769 = vpop.f32.mrf.mxu0
          %v770 = vadd.f32 0.0, %v769
          %v771 = vpop.f32.mrf.mxu0
          %772 = vdwg.mxu0
          %v773 = vld [vmem:[%s444] sm:$0xff]
          %v774 = vld [vmem:[%s444 + $0x8] sm:$0xff]
          %v775 = vld [vmem:[%s444 + $0x10] sm:$0xff]
          %v776 = vld [vmem:[%s444 + $0x18] sm:$0xff]
          %v777 = vld [vmem:[%s444 + $0x20] sm:$0xff]
          %v778 = vld [vmem:[%s444 + $0x28] sm:$0xff]
          %v779 = vld [vmem:[%s444 + $0x30] sm:$0xff]
          %v780 = vadd.f32 %v773, %v755
          %v781 = vadd.f32 %v774, %v757
          %v782 = vadd.f32 %v775, %v760
          %v783 = vadd.f32 %v776, %v762
          %v784 = vadd.f32 %v777, %v765
          %v785 = vadd.f32 %v778, %v767
          %v786 = vadd.f32 %v779, %v770
          %787 = vst.msk [vmem:[%s444] sm:$0xff] %vm364, %v780
          %788 = vst.msk [vmem:[%s444 + $0x8] sm:$0xff] %vm364, %v781
          %789 = vst.msk [vmem:[%s444 + $0x10] sm:$0xff] %vm364, %v782
          %790 = vst.msk [vmem:[%s444 + $0x18] sm:$0xff] %vm364, %v783
          %791 = vst.msk [vmem:[%s444 + $0x20] sm:$0xff] %vm364, %v784
          %792 = vst.msk [vmem:[%s444 + $0x28] sm:$0xff] %vm364, %v785
          %793 = vst.msk [vmem:[%s444 + $0x30] sm:$0xff] %vm364, %v786
          %v795 = vshrl.u32 %v614, 16
          %v797 = vrot.slane %v795, 4
          %v798 = vshll.u32 %v614, 16
          %v800 = vrot.slane %v798, 5
          %v801 = vor.u32 %v797, %v800
          %v802 = vrot.slane %v801, 4
          %v804 = vshll.u32 %v615, 16
          %v806 = vrot.slane %v804, 5
          %v807 = vsel %vm618, %v802, %v806
          %s808 = scalar_lea.vmem %s2, 16
          %v809 = vld [vmem:[%s808] sm:$0xf]
          %v810 = vunpack.c.l.b16 %v807
          %v811 = vpack.c.b16 %v810, %v725
          %v813 = vsel %vm364, %v811, 0
          %v816 = vsel %vm412, %v809, 0
          %818 = vmatpush.bf16.msra.mxu0 0
          %819 = vmatpush.bf16.msra.mxu0 0
          %820 = vmatpush.bf16.msra.mxu0 0
          %821 = vmatpush.bf16.msra.mxu0 0
          %822 = vmatpush.bf16.msra.mxu0 0
          %823 = vmatpush.bf16.msra.mxu0 0
          %824 = vmatpush.bf16.msra.mxu0 0
          %825 = vmatpush.bf16.msra.mxu0 %v816
          %826 = vmatmul.bf16.gmra.mxu0 %v731
          %v827 = vpop.f32.mrf.mxu0
          %v828 = vadd.f32 0.0, %v827
          %v829 = vpop.f32.mrf.mxu0
          %v830 = vadd.f32 0.0, %v829
          %831 = vmatmul.bf16.gmra.mxu0 %v734
          %v832 = vpop.f32.mrf.mxu0
          %v833 = vadd.f32 0.0, %v832
          %v834 = vpop.f32.mrf.mxu0
          %v835 = vadd.f32 0.0, %v834
          %836 = vmatmul.bf16.gmra.mxu0 %v737
          %v837 = vpop.f32.mrf.mxu0
          %v838 = vadd.f32 0.0, %v837
          %v839 = vpop.f32.mrf.mxu0
          %v840 = vadd.f32 0.0, %v839
          %841 = vmatmul.bf16.gmra.mxu0 %v813
          %v842 = vpop.f32.mrf.mxu0
          %v843 = vadd.f32 0.0, %v842
          %v844 = vpop.f32.mrf.mxu0
          %v845 = vadd.f32 0.0, %v844
          %846 = vdwg.mxu0
          %v847 = vld [vmem:[#allocation2] sm:$0xff]
          %v848 = vld [vmem:[#allocation2 + $0x8] sm:$0xff]
          %v849 = vld [vmem:[#allocation2 + $0x10] sm:$0xff]
          %v850 = vld [vmem:[#allocation2 + $0x18] sm:$0xff]
          %v851 = vld [vmem:[#allocation2 + $0x20] sm:$0xff]
          %v852 = vld [vmem:[#allocation2 + $0x28] sm:$0xff]
          %v853 = vld [vmem:[#allocation2 + $0x30] sm:$0xff]
          %v854 = vld [vmem:[#allocation2 + $0x38] sm:$0xff]
          %v855 = vadd.f32 %v847, %v828
          %v856 = vadd.f32 %v848, %v830
          %v857 = vadd.f32 %v849, %v833
          %v858 = vadd.f32 %v850, %v835
          %v859 = vadd.f32 %v851, %v838
          %v860 = vadd.f32 %v852, %v840
          %v861 = vadd.f32 %v853, %v843
          %v862 = vadd.f32 %v854, %v845
          %863 = vst.msk [vmem:[#allocation2] sm:$0xff] %vm364, %v855
          %864 = vst.msk [vmem:[#allocation2 + $0x8] sm:$0xff] %vm364, %v856
          %865 = vst.msk [vmem:[#allocation2 + $0x10] sm:$0xff] %vm364, %v857
          %866 = vst.msk [vmem:[#allocation2 + $0x18] sm:$0xff] %vm364, %v858
          %867 = vst.msk [vmem:[#allocation2 + $0x20] sm:$0xff] %vm364, %v859
          %868 = vst.msk [vmem:[#allocation2 + $0x28] sm:$0xff] %vm364, %v860
          %869 = vst.msk [vmem:[#allocation2 + $0x30] sm:$0xff] %vm364, %v861
          %870 = vst.msk [vmem:[#allocation2 + $0x38] sm:$0xff] %vm364, %v862
          %s871 = scalar_lea.vmem %s2, 28
          %v872 = vld [vmem:[%s871] sm:$0xf]
          %v873 = vpack.c.b16 %v721, %v720
          %v874 = vpack.c.b16 %v723, %v722
          %v875 = vpack.c.b16 %v725, %v724
          %v876 = vpack.c.b16 %v810, %v810
          %v878 = vsel %vm364, %v873, 0
          %v881 = vsel %vm364, %v874, 0
          %v884 = vsel %vm364, %v875, 0
          %v887 = vsel %vm364, %v876, 0
          %v890 = vsel %vm412, %v872, 0
          %892 = vmatpush.bf16.msra.mxu0 0
          %893 = vmatpush.bf16.msra.mxu0 0
          %894 = vmatpush.bf16.msra.mxu0 0
          %895 = vmatpush.bf16.msra.mxu0 0
          %896 = vmatpush.bf16.msra.mxu0 0
          %897 = vmatpush.bf16.msra.mxu0 0
          %898 = vmatpush.bf16.msra.mxu0 0
          %899 = vmatpush.bf16.msra.mxu0 %v890
          %900 = vmatmul.bf16.gmra.mxu0 %v878
          %v901 = vpop.f32.mrf.mxu0
          %v902 = vadd.f32 0.0, %v901
          %v903 = vpop.f32.mrf.mxu0
          %v904 = vadd.f32 0.0, %v903
          %905 = vmatmul.bf16.gmra.mxu0 %v881
          %v906 = vpop.f32.mrf.mxu0
          %v907 = vadd.f32 0.0, %v906
          %v908 = vpop.f32.mrf.mxu0
          %v909 = vadd.f32 0.0, %v908
          %910 = vmatmul.bf16.gmra.mxu0 %v884
          %v911 = vpop.f32.mrf.mxu0
          %v912 = vadd.f32 0.0, %v911
          %v913 = vpop.f32.mrf.mxu0
          %v914 = vadd.f32 0.0, %v913
          %915 = vmatmul.bf16.gmra.mxu0 %v887
          %v916 = vpop.f32.mrf.mxu0
          %v917 = vadd.f32 0.0, %v916
          %v918 = vpop.f32.mrf.mxu0
          %919 = vdwg.mxu0
          %v920 = vld [vmem:[#allocation2] sm:$0xff]
          %v921 = vld [vmem:[#allocation2 + $0x8] sm:$0xff]
          %v922 = vld [vmem:[#allocation2 + $0x10] sm:$0xff]
          %v923 = vld [vmem:[#allocation2 + $0x18] sm:$0xff]
          %v924 = vld [vmem:[#allocation2 + $0x20] sm:$0xff]
          %v925 = vld [vmem:[#allocation2 + $0x28] sm:$0xff]
          %v926 = vld [vmem:[#allocation2 + $0x30] sm:$0xff]
          %v927 = vadd.f32 %v920, %v902
          %v928 = vadd.f32 %v921, %v904
          %v929 = vadd.f32 %v922, %v907
          %v930 = vadd.f32 %v923, %v909
          %v931 = vadd.f32 %v924, %v912
          %v932 = vadd.f32 %v925, %v914
          %v933 = vadd.f32 %v926, %v917
          %934 = vst.msk [vmem:[#allocation2] sm:$0xff] %vm364, %v927
          %935 = vst.msk [vmem:[#allocation2 + $0x8] sm:$0xff] %vm364, %v928
          %936 = vst.msk [vmem:[#allocation2 + $0x10] sm:$0xff] %vm364, %v929
          %937 = vst.msk [vmem:[#allocation2 + $0x18] sm:$0xff] %vm364, %v930
          %938 = vst.msk [vmem:[#allocation2 + $0x20] sm:$0xff] %vm364, %v931
          %939 = vst.msk [vmem:[#allocation2 + $0x28] sm:$0xff] %vm364, %v932
          %940 = vst.msk [vmem:[#allocation2 + $0x30] sm:$0xff] %vm364, %v933
          %v941 = vld [vmem:[%s342] sm:$0xe]
          %v942 = vld [vmem:[%s342 + $0x4] sm:$0x1]
          %v943 = vld [vmem:[%s342 + $0x8] sm:$0xe]
          %v944 = vld [vmem:[%s342 + $0xc] sm:$0x1]
          %v945 = vld [vmem:[%s342 + $0x10] sm:$0xe]
          %v946 = vld [vmem:[%s342 + $0x14] sm:$0x1]
          %v947 = vld [vmem:[%s342 + $0x18] sm:$0xe]
          %v948 = vld [vmem:[%s342 + $0x1c] sm:$0x1]
          %v949 = vld [vmem:[%s342 + $0x20] sm:$0xe]
          %v950 = vld [vmem:[%s342 + $0x24] sm:$0x1]
          %v951 = vld [vmem:[%s342 + $0x28] sm:$0xe]
          %v952 = vld [vmem:[%s342 + $0x2c] sm:$0x1]
          %v953 = vld [vmem:[%s342 + $0x30] sm:$0xe]
          %v954 = vld [vmem:[%s342 + $0x34] sm:$0x1]
          %v955 = vld [vmem:[%s342 + $0x38] sm:$0xe]
          %v956 = vld [vmem:[%s342 + $0x3c] sm:$0x1]
          %vm971 = vcmask 1042432
          %vm972 = vcmask 1046532
          %vm973 = vmor %vm971, %vm972
          %v974 = vrot.slane %v941, 5
          %v975 = vrot.slane %v974, 4
          %v976 = vrot.slane %v942, 5
          %v977 = vsel %vm973, %v975, %v976
          %v978 = vrot.slane %v943, 5
          %v979 = vrot.slane %v978, 4
          %v980 = vrot.slane %v944, 5
          %v981 = vsel %vm973, %v979, %v980
          %v982 = vrot.slane %v945, 5
          %v983 = vrot.slane %v982, 4
          %v984 = vrot.slane %v946, 5
          %v985 = vsel %vm973, %v983, %v984
          %v986 = vrot.slane %v947, 5
          %v987 = vrot.slane %v986, 4
          %v988 = vrot.slane %v948, 5
          %v989 = vsel %vm973, %v987, %v988
          %v990 = vrot.slane %v949, 5
          %v991 = vrot.slane %v990, 4
          %v992 = vrot.slane %v950, 5
          %v993 = vsel %vm973, %v991, %v992
          %v994 = vrot.slane %v951, 5
          %v995 = vrot.slane %v994, 4
          %v996 = vrot.slane %v952, 5
          %v997 = vsel %vm973, %v995, %v996
          %v998 = vrot.slane %v953, 5
          %v999 = vrot.slane %v998, 4
          %v1000 = vrot.slane %v954, 5
          %v1001 = vsel %vm973, %v999, %v1000
          %s1002 = scalar_lea.vmem %s2, 8
          %v1003 = vld [vmem:[%s1002] sm:$0xf]
          %v1004 = vunpack.c.l.b16 %v977
          %v1005 = vunpack.c.l.b16 %v981
          %v1006 = vunpack.c.l.b16 %v985
          %v1007 = vunpack.c.l.b16 %v989
          %v1008 = vunpack.c.l.b16 %v993
          %v1009 = vunpack.c.l.b16 %v997
          %v1010 = vunpack.c.l.b16 %v1001
          %v1011 = vpack.c.b16 %v1005, %v1004
          %v1012 = vpack.c.b16 %v1007, %v1006
          %v1013 = vpack.c.b16 %v1009, %v1008
          %v1014 = vpack.c.b16 %v1010, %v1010
          %v1016 = vsel %vm364, %v1011, 0
          %v1019 = vsel %vm364, %v1012, 0
          %v1022 = vsel %vm364, %v1013, 0
          %v1025 = vsel %vm364, %v1014, 0
          %v1028 = vsel %vm412, %v1003, 0
          %1030 = vmatpush.bf16.msra.mxu0 0
          %1031 = vmatpush.bf16.msra.mxu0 0
          %1032 = vmatpush.bf16.msra.mxu0 0
          %1033 = vmatpush.bf16.msra.mxu0 0
          %1034 = vmatpush.bf16.msra.mxu0 0
          %1035 = vmatpush.bf16.msra.mxu0 0
          %1036 = vmatpush.bf16.msra.mxu0 0
          %1037 = vmatpush.bf16.msra.mxu0 %v1028
          %1038 = vmatmul.bf16.gmra.mxu0 %v1016
          %v1039 = vpop.f32.mrf.mxu0
          %v1040 = vadd.f32 0.0, %v1039
          %v1041 = vpop.f32.mrf.mxu0
          %v1042 = vadd.f32 0.0, %v1041
          %1043 = vmatmul.bf16.gmra.mxu0 %v1019
          %v1044 = vpop.f32.mrf.mxu0
          %v1045 = vadd.f32 0.0, %v1044
          %v1046 = vpop.f32.mrf.mxu0
          %v1047 = vadd.f32 0.0, %v1046
          %1048 = vmatmul.bf16.gmra.mxu0 %v1022
          %v1049 = vpop.f32.mrf.mxu0
          %v1050 = vadd.f32 0.0, %v1049
          %v1051 = vpop.f32.mrf.mxu0
          %v1052 = vadd.f32 0.0, %v1051
          %1053 = vmatmul.bf16.gmra.mxu0 %v1025
          %v1054 = vpop.f32.mrf.mxu0
          %v1055 = vadd.f32 0.0, %v1054
          %v1056 = vpop.f32.mrf.mxu0
          %1057 = vdwg.mxu0
          %v1058 = vld [vmem:[%s444] sm:$0xff]
          %v1059 = vld [vmem:[%s444 + $0x8] sm:$0xff]
          %v1060 = vld [vmem:[%s444 + $0x10] sm:$0xff]
          %v1061 = vld [vmem:[%s444 + $0x18] sm:$0xff]
          %v1062 = vld [vmem:[%s444 + $0x20] sm:$0xff]
          %v1063 = vld [vmem:[%s444 + $0x28] sm:$0xff]
          %v1064 = vld [vmem:[%s444 + $0x30] sm:$0xff]
          %v1065 = vadd.f32 %v1058, %v1040
          %v1066 = vadd.f32 %v1059, %v1042
          %v1067 = vadd.f32 %v1060, %v1045
          %v1068 = vadd.f32 %v1061, %v1047
          %v1069 = vadd.f32 %v1062, %v1050
          %v1070 = vadd.f32 %v1063, %v1052
          %v1071 = vadd.f32 %v1064, %v1055
          %1072 = vst.msk [vmem:[%s444] sm:$0xff] %vm364, %v1065
          %1073 = vst.msk [vmem:[%s444 + $0x8] sm:$0xff] %vm364, %v1066
          %1074 = vst.msk [vmem:[%s444 + $0x10] sm:$0xff] %vm364, %v1067
          %1075 = vst.msk [vmem:[%s444 + $0x18] sm:$0xff] %vm364, %v1068
          %1076 = vst.msk [vmem:[%s444 + $0x20] sm:$0xff] %vm364, %v1069
          %1077 = vst.msk [vmem:[%s444 + $0x28] sm:$0xff] %vm364, %v1070
          %1078 = vst.msk [vmem:[%s444 + $0x30] sm:$0xff] %vm364, %v1071
          %v1081 = vrot.slane %v955, 5
          %v1082 = vrot.slane %v1081, 4
          %v1083 = vrot.slane %v956, 5
          %v1084 = vsel %vm973, %v1082, %v1083
          %s1085 = scalar_lea.vmem %s2, 20
          %v1086 = vld [vmem:[%s1085] sm:$0xf]
          %v1087 = vunpack.c.l.b16 %v1084
          %v1088 = vpack.c.b16 %v1087, %v1010
          %v1090 = vsel %vm364, %v1088, 0
          %v1093 = vsel %vm412, %v1086, 0
          %1095 = vmatpush.bf16.msra.mxu0 0
          %1096 = vmatpush.bf16.msra.mxu0 0
          %1097 = vmatpush.bf16.msra.mxu0 0
          %1098 = vmatpush.bf16.msra.mxu0 0
          %1099 = vmatpush.bf16.msra.mxu0 0
          %1100 = vmatpush.bf16.msra.mxu0 0
          %1101 = vmatpush.bf16.msra.mxu0 0
          %1102 = vmatpush.bf16.msra.mxu0 %v1093
          %1103 = vmatmul.bf16.gmra.mxu0 %v1016
          %v1104 = vpop.f32.mrf.mxu0
          %v1105 = vadd.f32 0.0, %v1104
          %v1106 = vpop.f32.mrf.mxu0
          %v1107 = vadd.f32 0.0, %v1106
          %1108 = vmatmul.bf16.gmra.mxu0 %v1019
          %v1109 = vpop.f32.mrf.mxu0
          %v1110 = vadd.f32 0.0, %v1109
          %v1111 = vpop.f32.mrf.mxu0
          %v1112 = vadd.f32 0.0, %v1111
          %1113 = vmatmul.bf16.gmra.mxu0 %v1022
          %v1114 = vpop.f32.mrf.mxu0
          %v1115 = vadd.f32 0.0, %v1114
          %v1116 = vpop.f32.mrf.mxu0
          %v1117 = vadd.f32 0.0, %v1116
          %1118 = vmatmul.bf16.gmra.mxu0 %v1090
          %v1119 = vpop.f32.mrf.mxu0
          %v1120 = vadd.f32 0.0, %v1119
          %v1121 = vpop.f32.mrf.mxu0
          %v1122 = vadd.f32 0.0, %v1121
          %1123 = vdwg.mxu0
          %v1124 = vld [vmem:[#allocation2] sm:$0xff]
          %v1125 = vld [vmem:[#allocation2 + $0x8] sm:$0xff]
          %v1126 = vld [vmem:[#allocation2 + $0x10] sm:$0xff]
          %v1127 = vld [vmem:[#allocation2 + $0x18] sm:$0xff]
          %v1128 = vld [vmem:[#allocation2 + $0x20] sm:$0xff]
          %v1129 = vld [vmem:[#allocation2 + $0x28] sm:$0xff]
          %v1130 = vld [vmem:[#allocation2 + $0x30] sm:$0xff]
          %v1131 = vld [vmem:[#allocation2 + $0x38] sm:$0xff]
          %v1132 = vadd.f32 %v1124, %v1105
          %v1133 = vadd.f32 %v1125, %v1107
          %v1134 = vadd.f32 %v1126, %v1110
          %v1135 = vadd.f32 %v1127, %v1112
          %v1136 = vadd.f32 %v1128, %v1115
          %v1137 = vadd.f32 %v1129, %v1117
          %v1138 = vadd.f32 %v1130, %v1120
          %v1139 = vadd.f32 %v1131, %v1122
          %1140 = vst.msk [vmem:[#allocation2] sm:$0xff] %vm364, %v1132
          %1141 = vst.msk [vmem:[#allocation2 + $0x8] sm:$0xff] %vm364, %v1133
          %1142 = vst.msk [vmem:[#allocation2 + $0x10] sm:$0xff] %vm364, %v1134
          %1143 = vst.msk [vmem:[#allocation2 + $0x18] sm:$0xff] %vm364, %v1135
          %1144 = vst.msk [vmem:[#allocation2 + $0x20] sm:$0xff] %vm364, %v1136
          %1145 = vst.msk [vmem:[#allocation2 + $0x28] sm:$0xff] %vm364, %v1137
          %1146 = vst.msk [vmem:[#allocation2 + $0x30] sm:$0xff] %vm364, %v1138
          %1147 = vst.msk [vmem:[#allocation2 + $0x38] sm:$0xff] %vm364, %v1139
          %s1148 = scalar_lea.vmem %s2, 32
          %v1149 = vld [vmem:[%s1148] sm:$0xf]
          %v1150 = vpack.c.b16 %v1006, %v1005
          %v1151 = vpack.c.b16 %v1008, %v1007
          %v1152 = vpack.c.b16 %v1010, %v1009
          %v1153 = vpack.c.b16 %v1087, %v1087
          %v1155 = vsel %vm364, %v1150, 0
          %v1158 = vsel %vm364, %v1151, 0
          %v1161 = vsel %vm364, %v1152, 0
          %v1164 = vsel %vm364, %v1153, 0
          %v1167 = vsel %vm412, %v1149, 0
          %1169 = vmatpush.bf16.msra.mxu0 0
          %1170 = vmatpush.bf16.msra.mxu0 0
          %1171 = vmatpush.bf16.msra.mxu0 0
          %1172 = vmatpush.bf16.msra.mxu0 0
          %1173 = vmatpush.bf16.msra.mxu0 0
          %1174 = vmatpush.bf16.msra.mxu0 0
          %1175 = vmatpush.bf16.msra.mxu0 0
          %1176 = vmatpush.bf16.msra.mxu0 %v1167
          %1177 = vmatmul.bf16.gmra.mxu0 %v1155
          %v1178 = vpop.f32.mrf.mxu0
          %v1179 = vadd.f32 0.0, %v1178
          %v1180 = vpop.f32.mrf.mxu0
          %v1181 = vadd.f32 0.0, %v1180
          %1182 = vmatmul.bf16.gmra.mxu0 %v1158
          %v1183 = vpop.f32.mrf.mxu0
          %v1184 = vadd.f32 0.0, %v1183
          %v1185 = vpop.f32.mrf.mxu0
          %v1186 = vadd.f32 0.0, %v1185
          %1187 = vmatmul.bf16.gmra.mxu0 %v1161
          %v1188 = vpop.f32.mrf.mxu0
          %v1189 = vadd.f32 0.0, %v1188
          %v1190 = vpop.f32.mrf.mxu0
          %v1191 = vadd.f32 0.0, %v1190
          %1192 = vmatmul.bf16.gmra.mxu0 %v1164
          %v1193 = vpop.f32.mrf.mxu0
          %v1194 = vadd.f32 0.0, %v1193
          %v1195 = vpop.f32.mrf.mxu0
          %1196 = vdwg.mxu0
          %v1197 = vld [vmem:[#allocation2] sm:$0xff]
          %v1198 = vld [vmem:[#allocation2 + $0x8] sm:$0xff]
          %v1199 = vld [vmem:[#allocation2 + $0x10] sm:$0xff]
          %v1200 = vld [vmem:[#allocation2 + $0x18] sm:$0xff]
          %v1201 = vld [vmem:[#allocation2 + $0x20] sm:$0xff]
          %v1202 = vld [vmem:[#allocation2 + $0x28] sm:$0xff]
          %v1203 = vld [vmem:[#allocation2 + $0x30] sm:$0xff]
          %v1204 = vadd.f32 %v1197, %v1179
          %v1205 = vadd.f32 %v1198, %v1181
          %v1206 = vadd.f32 %v1199, %v1184
          %v1207 = vadd.f32 %v1200, %v1186
          %v1208 = vadd.f32 %v1201, %v1189
          %v1209 = vadd.f32 %v1202, %v1191
          %v1210 = vadd.f32 %v1203, %v1194
          %1211 = vst.msk [vmem:[#allocation2] sm:$0xff] %vm364, %v1204
          %1212 = vst.msk [vmem:[#allocation2 + $0x8] sm:$0xff] %vm364, %v1205
          %1213 = vst.msk [vmem:[#allocation2 + $0x10] sm:$0xff] %vm364, %v1206
          %1214 = vst.msk [vmem:[#allocation2 + $0x18] sm:$0xff] %vm364, %v1207
          %1215 = vst.msk [vmem:[#allocation2 + $0x20] sm:$0xff] %vm364, %v1208
          %1216 = vst.msk [vmem:[#allocation2 + $0x28] sm:$0xff] %vm364, %v1209
          %1217 = vst.msk [vmem:[#allocation2 + $0x30] sm:$0xff] %vm364, %v1210
          %v1218 = vld [vmem:[#allocation2] sm:$0xff]
          %v1219 = vld [vmem:[#allocation2 + $0x8] sm:$0xff]
          %v1220 = vld [vmem:[#allocation2 + $0x10] sm:$0xff]
          %v1221 = vld [vmem:[#allocation2 + $0x18] sm:$0xff]
          %v1222 = vld [vmem:[#allocation2 + $0x20] sm:$0xff]
          %v1223 = vld [vmem:[#allocation2 + $0x28] sm:$0xff]
          %v1224 = vld [vmem:[#allocation2 + $0x30] sm:$0xff]
          %v1225 = vld [vmem:[#allocation2 + $0x38] sm:$0xff]
          %v1226 = vld [vmem:[%s5] sm:$0x1]
          %v1228 = vperm.slane %v1226, 0
          %v1230 = vadd.f32 %v1218, %v1228
          %v1231 = vadd.f32 %v1219, %v1228
          %v1232 = vadd.f32 %v1220, %v1228
          %v1233 = vadd.f32 %v1221, %v1228
          %v1234 = vadd.f32 %v1222, %v1228
          %v1235 = vadd.f32 %v1223, %v1228
          %v1236 = vadd.f32 %v1224, %v1228
          %v1237 = vadd.f32 %v1225, %v1228
          %v1238 = vmax.f32 %v1230, 0.0
          %v1239 = vmax.f32 %v1231, 0.0
          %v1240 = vmax.f32 %v1232, 0.0
          %v1241 = vmax.f32 %v1233, 0.0
          %v1242 = vmax.f32 %v1234, 0.0
          %v1243 = vmax.f32 %v1235, 0.0
          %v1244 = vmax.f32 %v1236, 0.0
          %v1245 = vmax.f32 %v1237, 0.0
          %v1246 = vpack.c.bf16 %v1238, %v1238
          %v1247 = vpack.c.bf16 %v1239, %v1239
          %v1248 = vpack.c.bf16 %v1240, %v1240
          %v1249 = vpack.c.bf16 %v1241, %v1241
          %v1250 = vpack.c.bf16 %v1242, %v1242
          %v1251 = vpack.c.bf16 %v1243, %v1243
          %v1252 = vpack.c.bf16 %v1244, %v1244
          %v1253 = vpack.c.bf16 %v1245, %v1245
          %vm1254 = vcmask 60416
          %1255 = vst.msk [vmem:[#allocation3] sm:$0xf] %vm1254, %v1246
          %1256 = vst.msk [vmem:[#allocation3 + $0x4] sm:$0xf] %vm1254, %v1247
          %1257 = vst.msk [vmem:[#allocation3 + $0x8] sm:$0xf] %vm1254, %v1248
          %1258 = vst.msk [vmem:[#allocation3 + $0xc] sm:$0xf] %vm1254, %v1249
          %1259 = vst.msk [vmem:[#allocation3 + $0x10] sm:$0xf] %vm1254, %v1250
          %1260 = vst.msk [vmem:[#allocation3 + $0x14] sm:$0xf] %vm1254, %v1251
          %1261 = vst.msk [vmem:[#allocation3 + $0x18] sm:$0xf] %vm1254, %v1252
          %1262 = vst.msk [vmem:[#allocation3 + $0x1c] sm:$0xf] %vm1254, %v1253
        $region52: #{conv_block_forward.3} parent=47 // pred_fallthru
          _
        %v1263 = vld [vmem:[%s347] sm:$0xf]
        %v1264 = vld [vmem:[%s347 + $0x4] sm:$0xf]
        %v1265 = vld [vmem:[%s347 + $0x8] sm:$0xf]
        %v1266 = vld [vmem:[%s347 + $0xc] sm:$0xf]
        %v1267 = vld [vmem:[%s347 + $0x10] sm:$0xf]
        %v1268 = vld [vmem:[%s347 + $0x14] sm:$0xf]
        %v1269 = vld [vmem:[%s347 + $0x18] sm:$0xf]
        %v1270 = vld [vmem:[%s347 + $0x1c] sm:$0xf]
        %v1271 = vld [vmem:[#allocation3] sm:$0xf]
        %v1272 = vld [vmem:[#allocation3 + $0x4] sm:$0xf]
        %v1273 = vld [vmem:[#allocation3 + $0x8] sm:$0xf]
        %v1274 = vld [vmem:[#allocation3 + $0xc] sm:$0xf]
        %v1275 = vld [vmem:[#allocation3 + $0x10] sm:$0xf]
        %v1276 = vld [vmem:[#allocation3 + $0x14] sm:$0xf]
        %v1277 = vld [vmem:[#allocation3 + $0x18] sm:$0xf]
        %v1278 = vld [vmem:[#allocation3 + $0x1c] sm:$0xf]
        %v1279 = vld [vmem:[%s351] sm:$0xf]
        %v1280 = vld [vmem:[%s355] sm:$0x3]
        %v1289 = vunpack.c.l.b16 %v1263
        %v1290 = vunpack.c.l.b16 %v1264
        %v1291 = vunpack.c.l.b16 %v1265
        %v1292 = vunpack.c.l.b16 %v1266
        %v1293 = vunpack.c.l.b16 %v1267
        %v1294 = vunpack.c.l.b16 %v1268
        %v1295 = vunpack.c.l.b16 %v1269
        %v1296 = vunpack.c.l.b16 %v1270
        %v1297 = vpack.c.b16 %v1290, %v1289
        %v1298 = vpack.c.b16 %v1292, %v1291
        %v1299 = vpack.c.b16 %v1294, %v1293
        %v1300 = vpack.c.b16 %v1296, %v1295
        %vm1301 = vcmask 31744
        %v1303 = vsel %vm1301, %v1297, 0
        %v1306 = vsel %vm1301, %v1298, 0
        %v1309 = vsel %vm1301, %v1299, 0
        %v1312 = vsel %vm1301, %v1300, 0
        %vm1314 = vcmask 1041408
        %v1316 = vsel %vm1314, %v1280, 0
        %1318 = vmatpush.bf16.msra.mxu0 0
        %1319 = vmatpush.bf16.msra.mxu0 0
        %1320 = vmatpush.bf16.msra.mxu0 0
        %1321 = vmatpush.bf16.msra.mxu0 0
        %1322 = vmatpush.bf16.msra.mxu0 0
        %1323 = vmatpush.bf16.msra.mxu0 0
        %1324 = vmatpush.bf16.msra.mxu0 0
        %1325 = vmatpush.bf16.msra.mxu0 %v1316
        %1326 = vmatmul.bf16.gmra.mxu0 %v1303
        %v1327 = vpop.f32.mrf.mxu0
        %v1328 = vadd.f32 0.0, %v1327
        %v1329 = vpop.f32.mrf.mxu0
        %v1330 = vadd.f32 0.0, %v1329
        %1331 = vmatmul.bf16.gmra.mxu0 %v1306
        %v1332 = vpop.f32.mrf.mxu0
        %v1333 = vadd.f32 0.0, %v1332
        %v1334 = vpop.f32.mrf.mxu0
        %v1335 = vadd.f32 0.0, %v1334
        %1336 = vmatmul.bf16.gmra.mxu0 %v1309
        %v1337 = vpop.f32.mrf.mxu0
        %v1338 = vadd.f32 0.0, %v1337
        %v1339 = vpop.f32.mrf.mxu0
        %v1340 = vadd.f32 0.0, %v1339
        %1341 = vmatmul.bf16.gmra.mxu0 %v1312
        %v1342 = vpop.f32.mrf.mxu0
        %v1343 = vadd.f32 0.0, %v1342
        %v1344 = vpop.f32.mrf.mxu0
        %v1345 = vadd.f32 0.0, %v1344
        %1346 = vdwg.mxu0
        %v1355 = vunpack.c.l.b16 %v1271
        %v1356 = vunpack.c.l.b16 %v1272
        %v1357 = vunpack.c.l.b16 %v1273
        %v1358 = vunpack.c.l.b16 %v1274
        %v1359 = vunpack.c.l.b16 %v1275
        %v1360 = vunpack.c.l.b16 %v1276
        %v1361 = vunpack.c.l.b16 %v1277
        %v1362 = vunpack.c.l.b16 %v1278
        %v1363 = vpack.c.b16 %v1356, %v1355
        %v1364 = vpack.c.b16 %v1358, %v1357
        %v1365 = vpack.c.b16 %v1360, %v1359
        %v1366 = vpack.c.b16 %v1362, %v1361
        %vm1367 = vcmask 64512
        %v1369 = vsel %vm1367, %v1363, 0
        %v1372 = vsel %vm1367, %v1364, 0
        %v1375 = vsel %vm1367, %v1365, 0
        %v1378 = vsel %vm1367, %v1366, 0
        %vm1380 = vcmask 1043456
        %v1382 = vsel %vm1380, %v1279, 0
        %1384 = vmatpush.bf16.msra.mxu0 0
        %1385 = vmatpush.bf16.msra.mxu0 0
        %1386 = vmatpush.bf16.msra.mxu0 0
        %1387 = vmatpush.bf16.msra.mxu0 0
        %1388 = vmatpush.bf16.msra.mxu0 0
        %1389 = vmatpush.bf16.msra.mxu0 0
        %1390 = vmatpush.bf16.msra.mxu0 0
        %1391 = vmatpush.bf16.msra.mxu0 %v1382
        %1392 = vmatmul.bf16.gmra.mxu0 %v1369
        %v1393 = vpop.f32.mrf.mxu0
        %v1394 = vadd.f32 %v1328, %v1393
        %v1395 = vpop.f32.mrf.mxu0
        %v1396 = vadd.f32 %v1330, %v1395
        %1397 = vmatmul.bf16.gmra.mxu0 %v1372
        %v1398 = vpop.f32.mrf.mxu0
        %v1399 = vadd.f32 %v1333, %v1398
        %v1400 = vpop.f32.mrf.mxu0
        %v1401 = vadd.f32 %v1335, %v1400
        %1402 = vmatmul.bf16.gmra.mxu0 %v1375
        %v1403 = vpop.f32.mrf.mxu0
        %v1404 = vadd.f32 %v1338, %v1403
        %v1405 = vpop.f32.mrf.mxu0
        %v1406 = vadd.f32 %v1340, %v1405
        %1407 = vmatmul.bf16.gmra.mxu0 %v1378
        %v1408 = vpop.f32.mrf.mxu0
        %v1409 = vadd.f32 %v1343, %v1408
        %v1410 = vpop.f32.mrf.mxu0
        %v1411 = vadd.f32 %v1345, %v1410
        %1412 = vdwg.mxu0
        %v1413 = vld [vmem:[%s358] sm:$0x1]
        %v1415 = vperm.slane %v1413, 0
        %v1417 = vadd.f32 %v1394, %v1415
        %v1418 = vadd.f32 %v1396, %v1415
        %v1419 = vadd.f32 %v1399, %v1415
        %v1420 = vadd.f32 %v1401, %v1415
        %v1421 = vadd.f32 %v1404, %v1415
        %v1422 = vadd.f32 %v1406, %v1415
        %v1423 = vadd.f32 %v1409, %v1415
        %v1424 = vadd.f32 %v1411, %v1415
        %v1425 = vmax.f32 %v1417, 0.0
        %v1426 = vmax.f32 %v1418, 0.0
        %v1427 = vmax.f32 %v1419, 0.0
        %v1428 = vmax.f32 %v1420, 0.0
        %v1429 = vmax.f32 %v1421, 0.0
        %v1430 = vmax.f32 %v1422, 0.0
        %v1431 = vmax.f32 %v1423, 0.0
        %v1432 = vmax.f32 %v1424, 0.0
        %vm1433 = vcmask 130048
        %1434 = vst.msk [vmem:[%s337] sm:$0xff] %vm1433, %v1425
        %1435 = vst.msk [vmem:[%s337 + $0x8] sm:$0xff] %vm1433, %v1426
        %1436 = vst.msk [vmem:[%s337 + $0x10] sm:$0xff] %vm1433, %v1427
        %1437 = vst.msk [vmem:[%s337 + $0x18] sm:$0xff] %vm1433, %v1428
        %1438 = vst.msk [vmem:[%s337 + $0x20] sm:$0xff] %vm1433, %v1429
        %1439 = vst.msk [vmem:[%s337 + $0x28] sm:$0xff] %vm1433, %v1430
        %1440 = vst.msk [vmem:[%s337 + $0x30] sm:$0xff] %vm1433, %v1431
        %1441 = vst.msk [vmem:[%s337 + $0x38] sm:$0xff] %vm1433, %v1432
        %s1442 = sand.u32 %s215, 1
        %s1443 = scalar_lea.sflag [#allocation5], %s1442
        %s1444 = sand.u32 %s215, 1
        %s1445 = smul.addr %s1444, 64
        %s1446 = scalar_lea.vmem [#allocation4], %s1445
        // Predicated region
        $region53: #{conv_block_forward.3} parent=47 // pred_check
          %p1447 = pneg %p225
        $region54: #{conv_block_forward.3} parent=47 // pred_check_branch
          %1449 = sbr.rel (%p1447) target = $region56
        $region55: #{conv_block_forward.3} parent=47 // pred_region
          %1451 = vsyncadd %s1443, 0
          %s1452 = smul.addr %s25, 8
          %s1453 = sadd.s32 %s26, %s1452
          %s1454 = smul.addr %s1453, 8
          %s1455 = scalar_lea.hbm %s7, %s1454
          %s1456 = sshll.u32 %s1446, 4
          %s1457 = int_to_ptr.vmem [resolvable:$true] %s1456
          %s1458 = sshll.u32 %s1455, 4
          %s1459 = int_to_ptr.hbm [resolvable:$true] %s1458
          %1464 = dma.vmem_to_hbm [thread:$0]  %s1457, 1024, %s1459, %s1443, 128, 128, 8
        $region56: #{conv_block_forward.3} parent=47 // pred_fallthru
          _
      $region48: #{conv_block_forward.3} parent=5 // pred_fallthru
        _
      %p1465 = scmp.le.s32.totalorder 2, %s16
      // Predicated region
      $region57: #{conv_block_forward.3} parent=5 // pred_check
        %p1466 = pneg %p1465
      $region58: #{conv_block_forward.3} parent=5 // pred_check_branch
        %1468 = sbr.rel (%p1466) target = $region60
      $region59: #{conv_block_forward.3} parent=5 // pred_region
        %s1469 = ssub.s32 %s16, 2
        // Predicated region
        $region61: #{conv_block_forward.3} parent=59 // pred_check
          %p1470 = pneg %p231
        $region62: #{conv_block_forward.3} parent=59 // pred_check_branch
          %1472 = sbr.rel (%p1470) target = $region64
        $region63: #{conv_block_forward.3} parent=59 // pred_region
          %s1473 = sand.u32 %s216, 1
          %s1474 = scalar_lea.sflag [#allocation5], %s1473
          %s1475 = sand.u32 %s216, 1
          %s1476 = smul.addr %s1475, 64
          %s1477 = scalar_lea.vmem [#allocation4], %s1476
          %1479 = dma.done %s1474, 1024
        $region64: #{conv_block_forward.3} parent=59 // pred_fallthru
          _
      $region60: #{conv_block_forward.3} parent=5 // pred_fallthru
        _
    $region6: #{conv_block_forward.3} parent=1 // loop_footer
      %s20 = sadd.s32 1, %s16
    $region7: #{conv_block_forward.3} parent=1 // loop_footer_branch
      %15 = sbr.rel target = $region3
    $region8: #{conv_block_forward.3} parent=1 // loop_exit
      _
    %1480 = vsyncpa [#allocation5], 1
    %s1481 = scalar_lea.sflag [#allocation5], 1
    %1482 = vsyncpa %s1481, 1

</llo_original>
